<compile_context>
chip_gen: v5e
topology: v5e:2x2
jax: 0.10.0
libtpu: 0.0.40
codegen_flags: <defaults>
</compile_context>

<pallas_src>
import jax
import jax.numpy as jnp
from jax.experimental import pallas as pl
from jax.experimental.pallas import tpu as pltpu  # noqa: F401  (kept for easy vmem/semantics tweaks)

# ----- problem sizes (small, consistent with the module's forward) -----
B = 2          # batch
H = W = 16     # state spatial size
C1 = 8         # hidden channels of first conv
HID = 32       # model.hidden_dim (second conv channels / head width)
A = 4          # action_dim
NEG_SLOPE = 0.01

C2 = 2 * C1    # conv1 channels, both branches fused          (16)
D2 = 2 * HID   # conv2 channels / head width, both branches   (64)
HP, WP = H + 2, W + 2                 # zero-padded spatial extent (18, 18)
GRID = B * HP * WP                    # flattened padded pixel positions (648)
DELTAS = tuple((ky - 1) * WP + (kx - 1) for ky in range(3) for kx in range(3))  # tap lane shifts

LOFF = 24      # lane offset of the pixel grid inside conv1-output rows
OWID = 768     # conv1-output lane width   (LOFF + GRID + 19 <= OWID)
SOFF = 48      # lane offset of the pixel grid inside the state-input row
SWID = 816     # state-input lane width    (SOFF - LOFF + 19 + OWID <= SWID)

# ----- packed parameter slab layout: one (88, 768) f32 array -----
PS_ROWS, PS_LANES = 88, OWID
R_CONV1 = 0           # rows 0:16   W1T (16,9)   lanes 0:9,   b1 (16,1) at lane 9
R_CONV2 = 16          # rows 16:80  W2T (64,144) lanes 0:144, b2 (64,1) at lane 144
C_B1 = 9
C_B2 = 9 * C2         # 144
C_WH1P = 256          # rows 0:64 lanes 256:320  (pooled part of head L1, block-diagonal)
C_WH2 = 320           # rows 0:64 lanes 320:384  (head L2, block-diagonal)
C_WH1A = 384          # rows 0:64 lanes 384:388  (action part of head L1)
C_BH1 = 388
C_BH2 = 389
C_WH3 = 390           # rows 0:2  lanes 390:454  (head L3, one row per branch)
C_BH3 = 454           # rows 0:2  lane 454
R_MASK = 80           # row 80 lanes 0:768: interior-pixel mask (grid at lane LOFF)


def _leaky(x):
    return jnp.where(x > 0, x, NEG_SLOPE * x)


def critic_kernel(s_ref, act_ref, ps_ref, q_ref):
    f32 = jnp.float32

    # ---- static carves of the packed parameter slab ----
    w1t = ps_ref[R_CONV1:R_CONV1 + C2, 0:9]                     # (16, 9)
    b1 = ps_ref[R_CONV1:R_CONV1 + C2, C_B1:C_B1 + 1]            # (16, 1)
    w2t = ps_ref[R_CONV2:R_CONV2 + D2, 0:9 * C2]                # (64, 144) block-diagonal
    b2 = ps_ref[R_CONV2:R_CONV2 + D2, C_B2:C_B2 + 1]            # (64, 1)
    wh1p = ps_ref[0:D2, C_WH1P:C_WH1P + D2]                     # (64, 64)
    wh2 = ps_ref[0:D2, C_WH2:C_WH2 + D2]                        # (64, 64)
    wh1a = ps_ref[0:D2, C_WH1A:C_WH1A + A]                      # (64, 4)
    bh1 = ps_ref[0:D2, C_BH1:C_BH1 + 1]                         # (64, 1)
    bh2 = ps_ref[0:D2, C_BH2:C_BH2 + 1]                         # (64, 1)
    wh3 = ps_ref[0:2, C_WH3:C_WH3 + D2]                         # (2, 64)
    bh3 = ps_ref[0:2, C_BH3:C_BH3 + 1]                          # (2, 1)
    mask_pad = ps_ref[R_MASK:R_MASK + 1, 0:OWID]                # (1, 768)
    mask_grid = ps_ref[R_MASK:R_MASK + 1, LOFF:LOFF + GRID]     # (1, 648)

    # ---- conv1: 9 taps = static lane slices of the flat padded state row; one MXU matmul ----
    x1 = jnp.concatenate(
        [s_ref[0:1, SOFF - LOFF + d: SOFF - LOFF + d + OWID] for d in DELTAS], axis=0)  # (9, 768)
    o1 = _leaky(jnp.dot(w1t, x1, preferred_element_type=f32) + b1) * mask_pad           # (16, 768)
    # mask zeroes the pad ring -> it becomes conv2's zero padding.

    # ---- conv2: im2col by 9 shifted lane slices; one block-diagonal MXU matmul ----
    x2 = jnp.concatenate([o1[:, LOFF + d: LOFF + d + GRID] for d in DELTAS], axis=0)    # (144, 648)
    o2 = _leaky(jnp.dot(w2t, x2, preferred_element_type=f32) + b2)                      # (64, 648)

    # ---- adaptive_avg_pool2d((1,1)): masked mean over each batch's interior pixels ----
    o2m = o2 * mask_grid
    pools = [jnp.sum(o2m[:, i * HP * WP:(i + 1) * HP * WP], axis=1, keepdims=True)
             for i in range(B)]
    pooled = jnp.concatenate(pools, axis=1) * (1.0 / (H * W))                           # (64, B)

    # ---- twin-Q MLP head (features x batch orientation, branch-fused weights) ----
    z = _leaky(jnp.dot(wh1p, pooled, preferred_element_type=f32)
               + jnp.dot(wh1a, act_ref[...], preferred_element_type=f32) + bh1)         # (64, B)
    z = _leaky(jnp.dot(wh2, z, preferred_element_type=f32) + bh2)                       # (64, B)
    q_ref[...] = (jnp.dot(wh3, z, preferred_element_type=f32) + bh3).astype(q_ref.dtype)


_COST = pl.CostEstimate(
    flops=2 * (C2 * 9 * OWID + D2 * (9 * C2) * GRID + D2 * (D2 + A) * B + D2 * D2 * B + 2 * D2 * B),
    transcendentals=0,
    bytes_accessed=4 * (SWID + A * B + PS_ROWS * PS_LANES + 2 * B),
)


def _critic_call(sflat, act_t, pslab):
    # Single grid step, full-array VMEM blocks (3 input DMAs + 1 tiny output store).
    return pl.pallas_call(
        critic_kernel,
        out_shape=jax.ShapeDtypeStruct((2, B), jnp.float32),
        cost_estimate=_COST,
    )(sflat, act_t, pslab)


@jax.jit
def critic_forward(state, action, pslab):
    """state: (B, H, W) f32  [torch: state.view(B, 1, H, W)], action: (B, A) f32.
    pslab: packed parameter slab from pack_params() (built ONCE, reused per call).
    Returns (q1, q2), each (B, 1)."""
    sg = jnp.pad(state.astype(jnp.float32), ((0, 0), (1, 1), (1, 1)))            # (B, 18, 18)
    sflat = jnp.pad(sg.reshape(1, GRID), ((0, 0), (SOFF, SWID - SOFF - GRID)))   # (1, 816)
    act_t = action.astype(jnp.float32).T                                          # (A, B)
    q = _critic_call(sflat, act_t, pslab)                                          # (2, B)
    return q[0].reshape(B, 1), q[1].reshape(B, 1)


# ----------------- one-time parameter packing (hoisted out of the forward path) --------------
def pack_params(p1, p2):
    """Pack both branches' parameters into a single (88, 768) f32 slab."""
    ps = jnp.zeros((PS_ROWS, PS_LANES), jnp.float32)

    # conv1: (3,3,1,C1) -> (C1, 9) per branch, row-stacked across branches.
    w1t = jnp.concatenate([p1["w1"].reshape(9, C1).T, p2["w1"].reshape(9, C1).T], axis=0)
    b1 = jnp.concatenate([p1["b1"], p2["b1"]], axis=1).T                          # (16, 1)
    ps = ps.at[R_CONV1:R_CONV1 + C2, 0:9].set(w1t)
    ps = ps.at[R_CONV1:R_CONV1 + C2, C_B1:C_B1 + 1].set(b1)

    # conv2: branch-block-diagonal (64, 144); lane index = tap*C2 + fused input channel.
    def conv2_block(w2, br):
        wt = jnp.transpose(w2.reshape(9, C1, HID), (2, 0, 1))                     # (HID, 9, C1)
        blk = jnp.zeros((HID, 9, C2), jnp.float32)
        blk = blk.at[:, :, br * C1:(br + 1) * C1].set(wt)
        return blk.reshape(HID, 9 * C2)

    w2t = jnp.concatenate([conv2_block(p1["w2"], 0), conv2_block(p2["w2"], 1)], axis=0)
    b2 = jnp.concatenate([p1["b2"], p2["b2"]], axis=1).T                          # (64, 1)
    ps = ps.at[R_CONV2:R_CONV2 + D2, 0:9 * C2].set(w2t)
    ps = ps.at[R_CONV2:R_CONV2 + D2, C_B2:C_B2 + 1].set(b2)

    # head layer 1: pooled part block-diagonal, action part row-stacked (all (out, in)).
    wh1p = jnp.zeros((D2, D2), jnp.float32)
    wh1p = wh1p.at[:HID, :HID].set(p1["wh1"][:HID].T).at[HID:, HID:].set(p2["wh1"][:HID].T)
    wh1a = jnp.concatenate([p1["wh1"][HID:].T, p2["wh1"][HID:].T], axis=0)        # (64, 4)
    bh1 = jnp.concatenate([p1["bh1"], p2["bh1"]], axis=1).T                       # (64, 1)

    # head layer 2: block-diagonal.
    wh2 = jnp.zeros((D2, D2), jnp.float32)
    wh2 = wh2.at[:HID, :HID].set(p1["wh2"].T).at[HID:, HID:].set(p2["wh2"].T)
    bh2 = jnp.concatenate([p1["bh2"], p2["bh2"]], axis=1).T                       # (64, 1)

    # head layer 3: one row per branch.
    wh3 = jnp.zeros((2, D2), jnp.float32)
    wh3 = wh3.at[0, :HID].set(p1["wh3"][:, 0]).at[1, HID:].set(p2["wh3"][:, 0])
    bh3 = jnp.concatenate([p1["bh3"], p2["bh3"]], axis=0)                         # (2, 1)

    ps = ps.at[0:D2, C_WH1P:C_WH1P + D2].set(wh1p)
    ps = ps.at[0:D2, C_WH2:C_WH2 + D2].set(wh2)
    ps = ps.at[0:D2, C_WH1A:C_WH1A + A].set(wh1a)
    ps = ps.at[0:D2, C_BH1:C_BH1 + 1].set(bh1)
    ps = ps.at[0:D2, C_BH2:C_BH2 + 1].set(bh2)
    ps = ps.at[0:2, C_WH3:C_WH3 + D2].set(wh3)
    ps = ps.at[0:2, C_BH3:C_BH3 + 1].set(bh3)

    # interior-pixel mask over the flattened padded grid (conv2 zero padding + pooling mask).
    mask = jnp.zeros((B, HP, WP), jnp.float32).at[:, 1:H + 1, 1:W + 1].set(1.0).reshape(GRID)
    ps = ps.at[R_MASK, LOFF:LOFF + GRID].set(mask)
    return ps


# ----------------- deterministic parameter init (synthetic "pretrained" weights) -------------
# TODO(synk): load_model(path) checkpoint loading has no in-script equivalent; weights are
#             synthesized deterministically instead.
def _uniform(key, shape, fan_in):
    bound = 1.0 / jnp.sqrt(jnp.float32(fan_in))
    return jax.random.uniform(key, shape, jnp.float32, -bound, bound)


def make_branch_params(key):
    ks = jax.random.split(key, 12)
    return {
        # conv weights stored as (ky, kx, Cin, Cout); head weights as (in, out)  (x @ W + b)
        "w1": _uniform(ks[0], (3, 3, 1, C1), 1 * 9),
        "b1": _uniform(ks[1], (1, C1), 1 * 9),
        "w2": _uniform(ks[2], (3, 3, C1, HID), C1 * 9),
        "b2": _uniform(ks[3], (1, HID), C1 * 9),
        "wh1": _uniform(ks[4], (HID + A, HID), HID + A),
        "bh1": _uniform(ks[5], (1, HID), HID + A),
        "wh2": _uniform(ks[6], (HID, HID), HID),
        "bh2": _uniform(ks[7], (1, HID), HID),
        "wh3": _uniform(ks[8], (HID, 1), HID),
        "bh3": _uniform(ks[9], (1, 1), HID),
    }


# ----------------- pure-JAX reference (same math, no Pallas) for a sanity check --------------
def _ref_branch(state, action, p):
    x = state.reshape(B, H, W, 1).astype(jnp.float32)
    xp = jnp.pad(x, ((0, 0), (1, 1), (1, 1), (0, 0)))
    h1 = jnp.zeros((B, H, W, C1), jnp.float32)
    for ky in range(3):
        for kx in range(3):
            h1 = h1 + jnp.einsum("bhwi,io->bhwo", xp[:, ky:ky + H, kx:kx + W, :], p["w1"][ky, kx])
    h1 = _leaky(h1 + p["b1"].reshape(1, 1, 1, C1))
    h1p = jnp.pad(h1, ((0, 0), (1, 1), (1, 1), (0, 0)))
    h2 = jnp.zeros((B, H, W, HID), jnp.float32)
    for ky in range(3):
        for kx in range(3):
            h2 = h2 + jnp.einsum("bhwi,io->bhwo", h1p[:, ky:ky + H, kx:kx + W, :], p["w2"][ky, kx])
    h2 = _leaky(h2 + p["b2"].reshape(1, 1, 1, HID))
    pooled = jnp.mean(h2, axis=(1, 2))
    feat = jnp.concatenate([pooled, action], axis=1)
    z = _leaky(feat @ p["wh1"] + p["bh1"])
    z = _leaky(z @ p["wh2"] + p["bh2"])
    return z @ p["wh3"] + p["bh3"]


if __name__ == "__main__":
    key = jax.random.PRNGKey(0)
    k_state, k_action, k_p1, k_p2 = jax.random.split(key, 4)

    state = jax.random.normal(k_state, (B, H, W), jnp.float32)   # torch: (b,h,w) -> view(b,1,h,w)
    action = jax.random.normal(k_action, (B, A), jnp.float32)
    params1 = make_branch_params(k_p1)
    params2 = make_branch_params(k_p2)

    # one-time parameter packing, hoisted out of the per-call path
    pslab = jax.block_until_ready(pack_params(params1, params2))

    q1, q2 = critic_forward(state, action, pslab)
    jax.block_until_ready((q1, q2))

    # correctness check against the pure-JAX reference
    q1_ref = _ref_branch(state, action, params1)
    q2_ref = _ref_branch(state, action, params2)
    assert q1.shape == (B, 1) and q2.shape == (B, 1)
    assert jnp.allclose(q1, q1_ref, rtol=2e-3, atol=2e-3)
    assert jnp.allclose(q2, q2_ref, rtol=2e-3, atol=2e-3)

    print("KERNEL_OK")
</pallas_src>

<mosaic_0001>
module attributes {stable_mosaic.version = 11 : i64} {
  func.func @critic_kernel(%arg0: memref<1x816xf32, #tpu.memory_space<vmem>>, %arg1: memref<4x2xf32, #tpu.memory_space<vmem>>, %arg2: memref<88x768xf32, #tpu.memory_space<vmem>>, %arg3: memref<2x2xf32, #tpu.memory_space<vmem>>) attributes {dimension_semantics = [], scalar_prefetch = 0 : i64, scratch_operands = 0 : i64, tpu.core_type = #tpu.core_type<tc>} {
    %c0 = arith.constant 0 : index
    %c0_0 = arith.constant 0 : index
    %0 = vector.load %arg2[%c0, %c0_0] : memref<88x768xf32, #tpu.memory_space<vmem>>, vector<16x9xf32>
    %c0_1 = arith.constant 0 : index
    %c9 = arith.constant 9 : index
    %1 = vector.load %arg2[%c0_1, %c9] : memref<88x768xf32, #tpu.memory_space<vmem>>, vector<16x1xf32>
    %c16 = arith.constant 16 : index
    %c0_2 = arith.constant 0 : index
    %2 = vector.load %arg2[%c16, %c0_2] : memref<88x768xf32, #tpu.memory_space<vmem>>, vector<64x144xf32>
    %c16_3 = arith.constant 16 : index
    %c144 = arith.constant 144 : index
    %3 = vector.load %arg2[%c16_3, %c144] : memref<88x768xf32, #tpu.memory_space<vmem>>, vector<64x1xf32>
    %c0_4 = arith.constant 0 : index
    %c256 = arith.constant 256 : index
    %4 = vector.load %arg2[%c0_4, %c256] : memref<88x768xf32, #tpu.memory_space<vmem>>, vector<64x64xf32>
    %c0_5 = arith.constant 0 : index
    %c320 = arith.constant 320 : index
    %5 = vector.load %arg2[%c0_5, %c320] : memref<88x768xf32, #tpu.memory_space<vmem>>, vector<64x64xf32>
    %c0_6 = arith.constant 0 : index
    %c384 = arith.constant 384 : index
    %6 = vector.load %arg2[%c0_6, %c384] : memref<88x768xf32, #tpu.memory_space<vmem>>, vector<64x4xf32>
    %c0_7 = arith.constant 0 : index
    %c388 = arith.constant 388 : index
    %7 = vector.load %arg2[%c0_7, %c388] : memref<88x768xf32, #tpu.memory_space<vmem>>, vector<64x1xf32>
    %c0_8 = arith.constant 0 : index
    %c389 = arith.constant 389 : index
    %8 = vector.load %arg2[%c0_8, %c389] : memref<88x768xf32, #tpu.memory_space<vmem>>, vector<64x1xf32>
    %c0_9 = arith.constant 0 : index
    %c390 = arith.constant 390 : index
    %9 = vector.load %arg2[%c0_9, %c390] : memref<88x768xf32, #tpu.memory_space<vmem>>, vector<2x64xf32>
    %c0_10 = arith.constant 0 : index
    %c454 = arith.constant 454 : index
    %10 = vector.load %arg2[%c0_10, %c454] : memref<88x768xf32, #tpu.memory_space<vmem>>, vector<2x1xf32>
    %c80 = arith.constant 80 : index
    %c0_11 = arith.constant 0 : index
    %11 = vector.load %arg2[%c80, %c0_11] : memref<88x768xf32, #tpu.memory_space<vmem>>, vector<1x768xf32>
    %c80_12 = arith.constant 80 : index
    %c24 = arith.constant 24 : index
    %12 = vector.load %arg2[%c80_12, %c24] : memref<88x768xf32, #tpu.memory_space<vmem>>, vector<1x648xf32>
    %c0_13 = arith.constant 0 : index
    %c5 = arith.constant 5 : index
    %13 = vector.load %arg0[%c0_13, %c5] : memref<1x816xf32, #tpu.memory_space<vmem>>, vector<1x768xf32>
    %c0_14 = arith.constant 0 : index
    %c6 = arith.constant 6 : index
    %14 = vector.load %arg0[%c0_14, %c6] : memref<1x816xf32, #tpu.memory_space<vmem>>, vector<1x768xf32>
    %c0_15 = arith.constant 0 : index
    %c7 = arith.constant 7 : index
    %15 = vector.load %arg0[%c0_15, %c7] : memref<1x816xf32, #tpu.memory_space<vmem>>, vector<1x768xf32>
    %c0_16 = arith.constant 0 : index
    %c23 = arith.constant 23 : index
    %16 = vector.load %arg0[%c0_16, %c23] : memref<1x816xf32, #tpu.memory_space<vmem>>, vector<1x768xf32>
    %c0_17 = arith.constant 0 : index
    %c24_18 = arith.constant 24 : index
    %17 = vector.load %arg0[%c0_17, %c24_18] : memref<1x816xf32, #tpu.memory_space<vmem>>, vector<1x768xf32>
    %c0_19 = arith.constant 0 : index
    %c25 = arith.constant 25 : index
    %18 = vector.load %arg0[%c0_19, %c25] : memref<1x816xf32, #tpu.memory_space<vmem>>, vector<1x768xf32>
    %c0_20 = arith.constant 0 : index
    %c41 = arith.constant 41 : index
    %19 = vector.load %arg0[%c0_20, %c41] : memref<1x816xf32, #tpu.memory_space<vmem>>, vector<1x768xf32>
    %c0_21 = arith.constant 0 : index
    %c42 = arith.constant 42 : index
    %20 = vector.load %arg0[%c0_21, %c42] : memref<1x816xf32, #tpu.memory_space<vmem>>, vector<1x768xf32>
    %c0_22 = arith.constant 0 : index
    %c43 = arith.constant 43 : index
    %21 = vector.load %arg0[%c0_22, %c43] : memref<1x816xf32, #tpu.memory_space<vmem>>, vector<1x768xf32>
    %22 = tpu.concatenate %13, %14, %15, %16, %17, %18, %19, %20, %21 in 0 : vector<1x768xf32>, vector<1x768xf32>, vector<1x768xf32>, vector<1x768xf32>, vector<1x768xf32>, vector<1x768xf32>, vector<1x768xf32>, vector<1x768xf32>, vector<1x768xf32> -> vector<9x768xf32>
    %cst = arith.constant dense<0.000000e+00> : vector<16x768xf32>
    %23 = tpu.matmul %0, %22, %cst {dimension_numbers = #tpu.dot_dimension_numbers<[1], [0], [0], [1], [0, 0, 1, 1], [], []>} : vector<16x9xf32>, vector<9x768xf32>, vector<16x768xf32> -> vector<16x768xf32>
    %24 = vector.broadcast %1 : vector<16x1xf32> to vector<16x768xf32>
    %25 = arith.addf %23, %24 : vector<16x768xf32>
    %cst_23 = arith.constant 0.000000e+00 : f32
    %26 = vector.broadcast %cst_23 : f32 to vector<16x768xf32>
    %27 = arith.cmpf ogt, %25, %26 : vector<16x768xf32>
    %cst_24 = arith.constant 0.00999999977 : f32
    %28 = vector.broadcast %cst_24 : f32 to vector<16x768xf32>
    %29 = arith.mulf %28, %25 : vector<16x768xf32>
    %30 = arith.select %27, %25, %29 : vector<16x768xi1>, vector<16x768xf32>
    %31 = vector.broadcast %11 : vector<1x768xf32> to vector<16x768xf32>
    %32 = arith.mulf %30, %31 : vector<16x768xf32>
    %33 = vector.extract_strided_slice %32 {offsets = [0, 5], sizes = [16, 648], strides = [1, 1]} : vector<16x768xf32> to vector<16x648xf32>
    %34 = vector.extract_strided_slice %32 {offsets = [0, 6], sizes = [16, 648], strides = [1, 1]} : vector<16x768xf32> to vector<16x648xf32>
    %35 = vector.extract_strided_slice %32 {offsets = [0, 7], sizes = [16, 648], strides = [1, 1]} : vector<16x768xf32> to vector<16x648xf32>
    %36 = vector.extract_strided_slice %32 {offsets = [0, 23], sizes = [16, 648], strides = [1, 1]} : vector<16x768xf32> to vector<16x648xf32>
    %37 = vector.extract_strided_slice %32 {offsets = [0, 24], sizes = [16, 648], strides = [1, 1]} : vector<16x768xf32> to vector<16x648xf32>
    %38 = vector.extract_strided_slice %32 {offsets = [0, 25], sizes = [16, 648], strides = [1, 1]} : vector<16x768xf32> to vector<16x648xf32>
    %39 = vector.extract_strided_slice %32 {offsets = [0, 41], sizes = [16, 648], strides = [1, 1]} : vector<16x768xf32> to vector<16x648xf32>
    %40 = vector.extract_strided_slice %32 {offsets = [0, 42], sizes = [16, 648], strides = [1, 1]} : vector<16x768xf32> to vector<16x648xf32>
    %41 = vector.extract_strided_slice %32 {offsets = [0, 43], sizes = [16, 648], strides = [1, 1]} : vector<16x768xf32> to vector<16x648xf32>
    %42 = tpu.concatenate %33, %34, %35, %36, %37, %38, %39, %40, %41 in 0 : vector<16x648xf32>, vector<16x648xf32>, vector<16x648xf32>, vector<16x648xf32>, vector<16x648xf32>, vector<16x648xf32>, vector<16x648xf32>, vector<16x648xf32>, vector<16x648xf32> -> vector<144x648xf32>
    %cst_25 = arith.constant dense<0.000000e+00> : vector<64x648xf32>
    %43 = tpu.matmul %2, %42, %cst_25 {dimension_numbers = #tpu.dot_dimension_numbers<[1], [0], [0], [1], [0, 0, 1, 1], [], []>} : vector<64x144xf32>, vector<144x648xf32>, vector<64x648xf32> -> vector<64x648xf32>
    %44 = vector.broadcast %3 : vector<64x1xf32> to vector<64x648xf32>
    %45 = arith.addf %43, %44 : vector<64x648xf32>
    %cst_26 = arith.constant 0.000000e+00 : f32
    %46 = vector.broadcast %cst_26 : f32 to vector<64x648xf32>
    %47 = arith.cmpf ogt, %45, %46 : vector<64x648xf32>
    %cst_27 = arith.constant 0.00999999977 : f32
    %48 = vector.broadcast %cst_27 : f32 to vector<64x648xf32>
    %49 = arith.mulf %48, %45 : vector<64x648xf32>
    %50 = arith.select %47, %45, %49 : vector<64x648xi1>, vector<64x648xf32>
    %51 = vector.broadcast %12 : vector<1x648xf32> to vector<64x648xf32>
    %52 = arith.mulf %50, %51 : vector<64x648xf32>
    %53 = vector.extract_strided_slice %52 {offsets = [0, 0], sizes = [64, 324], strides = [1, 1]} : vector<64x648xf32> to vector<64x324xf32>
    %cst_28 = arith.constant dense<0.000000e+00> : vector<64xf32>
    %54 = vector.multi_reduction <add>, %53, %cst_28 [1] : vector<64x324xf32> to vector<64xf32>
    %55 = vector.shape_cast %54 : vector<64xf32> to vector<64x1xf32>
    %56 = vector.extract_strided_slice %52 {offsets = [0, 324], sizes = [64, 324], strides = [1, 1]} : vector<64x648xf32> to vector<64x324xf32>
    %cst_29 = arith.constant dense<0.000000e+00> : vector<64xf32>
    %57 = vector.multi_reduction <add>, %56, %cst_29 [1] : vector<64x324xf32> to vector<64xf32>
    %58 = vector.shape_cast %57 : vector<64xf32> to vector<64x1xf32>
    %59 = tpu.concatenate %55, %58 in 1 : vector<64x1xf32>, vector<64x1xf32> -> vector<64x2xf32>
    %cst_30 = arith.constant 3.906250e-03 : f32
    %60 = vector.broadcast %cst_30 : f32 to vector<64x2xf32>
    %61 = arith.mulf %59, %60 : vector<64x2xf32>
    %cst_31 = arith.constant dense<0.000000e+00> : vector<64x2xf32>
    %62 = tpu.matmul %4, %61, %cst_31 {dimension_numbers = #tpu.dot_dimension_numbers<[1], [0], [0], [1], [0, 0, 1, 1], [], []>} : vector<64x64xf32>, vector<64x2xf32>, vector<64x2xf32> -> vector<64x2xf32>
    %c0_32 = arith.constant 0 : index
    %c0_33 = arith.constant 0 : index
    %63 = vector.load %arg1[%c0_32, %c0_33] : memref<4x2xf32, #tpu.memory_space<vmem>>, vector<4x2xf32>
    %cst_34 = arith.constant dense<0.000000e+00> : vector<64x2xf32>
    %64 = tpu.matmul %6, %63, %cst_34 {dimension_numbers = #tpu.dot_dimension_numbers<[1], [0], [0], [1], [0, 0, 1, 1], [], []>} : vector<64x4xf32>, vector<4x2xf32>, vector<64x2xf32> -> vector<64x2xf32>
    %65 = arith.addf %62, %64 : vector<64x2xf32>
    %66 = vector.broadcast %7 : vector<64x1xf32> to vector<64x2xf32>
    %67 = arith.addf %65, %66 : vector<64x2xf32>
    %cst_35 = arith.constant 0.000000e+00 : f32
    %68 = vector.broadcast %cst_35 : f32 to vector<64x2xf32>
    %69 = arith.cmpf ogt, %67, %68 : vector<64x2xf32>
    %cst_36 = arith.constant 0.00999999977 : f32
    %70 = vector.broadcast %cst_36 : f32 to vector<64x2xf32>
    %71 = arith.mulf %70, %67 : vector<64x2xf32>
    %72 = arith.select %69, %67, %71 : vector<64x2xi1>, vector<64x2xf32>
    %cst_37 = arith.constant dense<0.000000e+00> : vector<64x2xf32>
    %73 = tpu.matmul %5, %72, %cst_37 {dimension_numbers = #tpu.dot_dimension_numbers<[1], [0], [0], [1], [0, 0, 1, 1], [], []>} : vector<64x64xf32>, vector<64x2xf32>, vector<64x2xf32> -> vector<64x2xf32>
    %74 = vector.broadcast %8 : vector<64x1xf32> to vector<64x2xf32>
    %75 = arith.addf %73, %74 : vector<64x2xf32>
    %cst_38 = arith.constant 0.000000e+00 : f32
    %76 = vector.broadcast %cst_38 : f32 to vector<64x2xf32>
    %77 = arith.cmpf ogt, %75, %76 : vector<64x2xf32>
    %cst_39 = arith.constant 0.00999999977 : f32
    %78 = vector.broadcast %cst_39 : f32 to vector<64x2xf32>
    %79 = arith.mulf %78, %75 : vector<64x2xf32>
    %80 = arith.select %77, %75, %79 : vector<64x2xi1>, vector<64x2xf32>
    %cst_40 = arith.constant dense<0.000000e+00> : vector<2x2xf32>
    %81 = tpu.matmul %9, %80, %cst_40 {dimension_numbers = #tpu.dot_dimension_numbers<[1], [0], [0], [1], [0, 0, 1, 1], [], []>} : vector<2x64xf32>, vector<64x2xf32>, vector<2x2xf32> -> vector<2x2xf32>
    %82 = vector.broadcast %10 : vector<2x1xf32> to vector<2x2xf32>
    %83 = arith.addf %81, %82 : vector<2x2xf32>
    %c0_41 = arith.constant 0 : index
    %c0_42 = arith.constant 0 : index
    %84 = vector.load %arg3[%c0_41, %c0_42] : memref<2x2xf32, #tpu.memory_space<vmem>>, vector<2x2xf32>
    tpu.vector_store %arg3[%c0_41, %c0_42], %83 {strides = array<i32>} : memref<2x2xf32, #tpu.memory_space<vmem>>, vector<2x2xf32>,
    return
  }
}

</mosaic_0001>

<llo_original>
// kernel: critic_forward.1
$region0: #{critic_forward.1}
  #allocation0 [shape = 'u32[]', space=smem, size = 0x4, offset = 0x4, fixed_abs, tag = 'smem constant byte address 0x4 - core index']
  #allocation1 [shape = 'u32[72,128]{1,0:T(1,128)}', space=vmem, size = 0x9000, scoped, tag = 'internal scratch']
  %s0 = inlined_call_operand.vmem [shape: f32[1,816], index: 0, kind: input, shape index: {}]
  %s1 = inlined_call_operand.vmem [shape: f32[4,2], index: 1, kind: input, shape index: {}]
  %s2 = inlined_call_operand.hbm [shape: f32[88,768], index: 2, kind: input, shape index: {}]
  %s3 = inlined_call_operand.vmem [shape: f32[2,2], index: 3, kind: output, shape index: {}]
  %s4 = sld [smem:[#allocation0]]
  $region26: #{critic_forward.1} parent=0
    _
  %s6 = ssub.s32 1, %s4
  %s7 = scalar_select 0, %s6, %s4
  $region1: #{critic_forward.1} parent=0
    #allocation2 [shape = 'u8[270336]{0}', space=vmem, size = 0x42000, scoped, tag = 'input window, operand 2, single buffered']
    #allocation3 [shape = 's32[1]{0}', space=sflag, size = 0x4, scoped, tag = 'scoped memory for critic_forward.1']
    %8 = vsyncpa [#allocation3], 0
    // Predicated region
    $region2: #{critic_forward.1} parent=1 // pred_check
      _
    $region3: #{critic_forward.1} parent=1 // pred_check_branch
      %10 = sbr.rel (0) target = $region5
    $region4: #{critic_forward.1} parent=1 // pred_region
      _
    $region5: #{critic_forward.1} parent=1 // pred_fallthru
      _
    // Predicated region
    $region6: #{critic_forward.1} parent=1 // pred_check
      _
    $region7: #{critic_forward.1} parent=1 // pred_check_branch
      %12 = sbr.rel (0) target = $region9
    $region8: #{critic_forward.1} parent=1 // pred_region
      _
    $region9: #{critic_forward.1} parent=1 // pred_fallthru
      _
    // Predicated region
    $region10: #{critic_forward.1} parent=1 // pred_check
      _
    $region11: #{critic_forward.1} parent=1 // pred_check_branch
      %14 = sbr.rel (0) target = $region13
    $region12: #{critic_forward.1} parent=1 // pred_region
      %16 = vsyncadd [#allocation3], 0
      %s17 = sshll.u32 %s2, 4
      %s18 = int_to_ptr.hbm [resolvable:$true] %s17
      %s19 = sshll.u32 [#allocation2], 4
      %s20 = int_to_ptr.vmem [resolvable:$true] %s19
      %25 = dma.hbm_to_vmem [thread:$0]  %s18, 8448, %s20, [#allocation3], 768, 768, 48
    $region13: #{critic_forward.1} parent=1 // pred_fallthru
      _
    // Predicated region
    $region14: #{critic_forward.1} parent=1 // pred_check
      _
    $region15: #{critic_forward.1} parent=1 // pred_check_branch
      %27 = sbr.rel (0) target = $region17
    $region16: #{critic_forward.1} parent=1 // pred_region
      %29 = dma.done [#allocation3], 8448
    $region17: #{critic_forward.1} parent=1 // pred_fallthru
      _
    %v30 = vld [vmem:[#allocation2] sm:$0xff]
    %v31 = vld [vmem:[#allocation2 + $0x30] sm:$0xff]
    %v32 = vld [vmem:[#allocation2 + $0x60] sm:$0xff]
    %v33 = vld [vmem:[#allocation2 + $0x68] sm:$0xff]
    %v34 = vld [vmem:[#allocation2 + $0x90] sm:$0xff]
    %v35 = vld [vmem:[#allocation2 + $0x98] sm:$0xff]
    %v36 = vld [vmem:[#allocation2 + $0xc0] sm:$0xff]
    %v37 = vld [vmem:[#allocation2 + $0xc8] sm:$0xff]
    %v38 = vld [vmem:[#allocation2 + $0xf0] sm:$0xff]
    %v39 = vld [vmem:[#allocation2 + $0xf8] sm:$0xff]
    %v40 = vld [vmem:[#allocation2 + $0x120] sm:$0xff]
    %v41 = vld [vmem:[#allocation2 + $0x128] sm:$0xff]
    %v42 = vld [vmem:[#allocation2 + $0x150] sm:$0xff]
    %v43 = vld [vmem:[#allocation2 + $0x158] sm:$0xff]
    %v44 = vld [vmem:[#allocation2 + $0x180] sm:$0xff]
    %v45 = vld [vmem:[#allocation2 + $0x188] sm:$0xff]
    %v46 = vld [vmem:[#allocation2 + $0x1b0] sm:$0xff]
    %v47 = vld [vmem:[#allocation2 + $0x1b8] sm:$0xff]
    %v48 = vld [vmem:[#allocation2 + $0x10] sm:$0xff]
    %v49 = vld [vmem:[#allocation2 + $0x40] sm:$0xff]
    %v50 = vld [vmem:[#allocation2 + $0x70] sm:$0xff]
    %v51 = vld [vmem:[#allocation2 + $0xa0] sm:$0xff]
    %v52 = vld [vmem:[#allocation2 + $0xd0] sm:$0xff]
    %v53 = vld [vmem:[#allocation2 + $0x100] sm:$0xff]
    %v54 = vld [vmem:[#allocation2 + $0x130] sm:$0xff]
    %v55 = vld [vmem:[#allocation2 + $0x160] sm:$0xff]
    %v56 = vld [vmem:[#allocation2 + $0x18] sm:$0xff]
    %v57 = vld [vmem:[#allocation2 + $0x48] sm:$0xff]
    %v58 = vld [vmem:[#allocation2 + $0x78] sm:$0xff]
    %v59 = vld [vmem:[#allocation2 + $0xa8] sm:$0xff]
    %v60 = vld [vmem:[#allocation2 + $0xd8] sm:$0xff]
    %v61 = vld [vmem:[#allocation2 + $0x108] sm:$0xff]
    %v62 = vld [vmem:[#allocation2 + $0x138] sm:$0xff]
    %v63 = vld [vmem:[#allocation2 + $0x168] sm:$0xff]
    %v64 = vld [vmem:[#allocation2 + $0x18] sm:$0x3]
    %s65 = scalar_lea.vmem [#allocation2], 480
    %v66 = vld [vmem:[%s65] ss:$8 sm:$0xf]
    %v67 = vld [vmem:[%s65] ss:$8 sm:$0x30]
    %v68 = vor.u32 %v66, %v67
    %v69 = vld [vmem:[%s0] sm:$0x7f]
    %v71 = vperm.slane %v69, 0
    %v72 = vperm.slane %v69, 1
    %v73 = vperm.slane %v69, 2
    %v74 = vperm.slane %v69, 3
    %v75 = vperm.slane %v69, 4
    %v76 = vperm.slane %v69, 5
    %v77 = vperm.slane %v69, 6
    %85 = vrot.lane.b32.xlu0 %v71, 127
    %v86 = vpop.permute.xlu0 %85
    %87 = vrot.lane.b32.xlu0 %v72, 127
    %v88 = vpop.permute.xlu0 %87
    %89 = vrot.lane.b32.xlu0 %v73, 127
    %v90 = vpop.permute.xlu0 %89
    %91 = vrot.lane.b32.xlu0 %v74, 127
    %v92 = vpop.permute.xlu0 %91
    %93 = vrot.lane.b32.xlu0 %v75, 127
    %v94 = vpop.permute.xlu0 %93
    %95 = vrot.lane.b32.xlu0 %v76, 127
    %v96 = vpop.permute.xlu0 %95
    %97 = vrot.lane.b32.xlu0 %v77, 127
    %v98 = vpop.permute.xlu0 %97
    %vm99 = vcmask 1039360
    %v100 = vsel %vm99, %v86, %v88
    %v101 = vsel %vm99, %v88, %v90
    %v102 = vsel %vm99, %v90, %v92
    %v103 = vsel %vm99, %v92, %v94
    %v104 = vsel %vm99, %v94, %v96
    %v105 = vsel %vm99, %v96, %v98
    %113 = vrot.lane.b32.xlu0 %v71, 126
    %v114 = vpop.permute.xlu0 %113
    %115 = vrot.lane.b32.xlu0 %v72, 126
    %v116 = vpop.permute.xlu0 %115
    %117 = vrot.lane.b32.xlu0 %v73, 126
    %v118 = vpop.permute.xlu0 %117
    %119 = vrot.lane.b32.xlu0 %v74, 126
    %v120 = vpop.permute.xlu0 %119
    %121 = vrot.lane.b32.xlu0 %v75, 126
    %v122 = vpop.permute.xlu0 %121
    %123 = vrot.lane.b32.xlu0 %v76, 126
    %v124 = vpop.permute.xlu0 %123
    %125 = vrot.lane.b32.xlu0 %v77, 126
    %v126 = vpop.permute.xlu0 %125
    %vm127 = vcmask 1031168
    %v128 = vsel %vm127, %v114, %v116
    %v129 = vsel %vm127, %v116, %v118
    %v130 = vsel %vm127, %v118, %v120
    %v131 = vsel %vm127, %v120, %v122
    %v132 = vsel %vm127, %v122, %v124
    %v133 = vsel %vm127, %v124, %v126
    %141 = vrot.lane.b32.xlu0 %v71, 110
    %v142 = vpop.permute.xlu0 %141
    %143 = vrot.lane.b32.xlu0 %v72, 110
    %v144 = vpop.permute.xlu0 %143
    %145 = vrot.lane.b32.xlu0 %v73, 110
    %v146 = vpop.permute.xlu0 %145
    %147 = vrot.lane.b32.xlu0 %v74, 110
    %v148 = vpop.permute.xlu0 %147
    %149 = vrot.lane.b32.xlu0 %v75, 110
    %v150 = vpop.permute.xlu0 %149
    %151 = vrot.lane.b32.xlu0 %v76, 110
    %v152 = vpop.permute.xlu0 %151
    %153 = vrot.lane.b32.xlu0 %v77, 110
    %v154 = vpop.permute.xlu0 %153
    %vm155 = vcmask 900096
    %v156 = vsel %vm155, %v142, %v144
    %v157 = vsel %vm155, %v144, %v146
    %v158 = vsel %vm155, %v146, %v148
    %v159 = vsel %vm155, %v148, %v150
    %v160 = vsel %vm155, %v150, %v152
    %v161 = vsel %vm155, %v152, %v154
    %169 = vrot.lane.b32.xlu0 %v71, 109
    %v170 = vpop.permute.xlu0 %169
    %171 = vrot.lane.b32.xlu0 %v72, 109
    %v172 = vpop.permute.xlu0 %171
    %173 = vrot.lane.b32.xlu0 %v73, 109
    %v174 = vpop.permute.xlu0 %173
    %175 = vrot.lane.b32.xlu0 %v74, 109
    %v176 = vpop.permute.xlu0 %175
    %177 = vrot.lane.b32.xlu0 %v75, 109
    %v178 = vpop.permute.xlu0 %177
    %179 = vrot.lane.b32.xlu0 %v76, 109
    %v180 = vpop.permute.xlu0 %179
    %181 = vrot.lane.b32.xlu0 %v77, 109
    %v182 = vpop.permute.xlu0 %181
    %vm183 = vcmask 891904
    %v184 = vsel %vm183, %v170, %v172
    %v185 = vsel %vm183, %v172, %v174
    %v186 = vsel %vm183, %v174, %v176
    %v187 = vsel %vm183, %v176, %v178
    %v188 = vsel %vm183, %v178, %v180
    %v189 = vsel %vm183, %v180, %v182
    %197 = vrot.lane.b32.xlu0 %v71, 108
    %v198 = vpop.permute.xlu0 %197
    %199 = vrot.lane.b32.xlu0 %v72, 108
    %v200 = vpop.permute.xlu0 %199
    %201 = vrot.lane.b32.xlu0 %v73, 108
    %v202 = vpop.permute.xlu0 %201
    %203 = vrot.lane.b32.xlu0 %v74, 108
    %v204 = vpop.permute.xlu0 %203
    %205 = vrot.lane.b32.xlu0 %v75, 108
    %v206 = vpop.permute.xlu0 %205
    %207 = vrot.lane.b32.xlu0 %v76, 108
    %v208 = vpop.permute.xlu0 %207
    %209 = vrot.lane.b32.xlu0 %v77, 108
    %v210 = vpop.permute.xlu0 %209
    %vm211 = vcmask 883712
    %v212 = vsel %vm211, %v198, %v200
    %v213 = vsel %vm211, %v200, %v202
    %v214 = vsel %vm211, %v202, %v204
    %v215 = vsel %vm211, %v204, %v206
    %v216 = vsel %vm211, %v206, %v208
    %v217 = vsel %vm211, %v208, %v210
    %225 = vrot.lane.b32.xlu0 %v71, 92
    %v226 = vpop.permute.xlu0 %225
    %227 = vrot.lane.b32.xlu0 %v72, 92
    %v228 = vpop.permute.xlu0 %227
    %229 = vrot.lane.b32.xlu0 %v73, 92
    %v230 = vpop.permute.xlu0 %229
    %231 = vrot.lane.b32.xlu0 %v74, 92
    %v232 = vpop.permute.xlu0 %231
    %233 = vrot.lane.b32.xlu0 %v75, 92
    %v234 = vpop.permute.xlu0 %233
    %235 = vrot.lane.b32.xlu0 %v76, 92
    %v236 = vpop.permute.xlu0 %235
    %237 = vrot.lane.b32.xlu0 %v77, 92
    %v238 = vpop.permute.xlu0 %237
    %vm239 = vcmask 752640
    %v240 = vsel %vm239, %v226, %v228
    %v241 = vsel %vm239, %v228, %v230
    %v242 = vsel %vm239, %v230, %v232
    %v243 = vsel %vm239, %v232, %v234
    %v244 = vsel %vm239, %v234, %v236
    %v245 = vsel %vm239, %v236, %v238
    %253 = vrot.lane.b32.xlu0 %v71, 91
    %v254 = vpop.permute.xlu0 %253
    %255 = vrot.lane.b32.xlu0 %v72, 91
    %v256 = vpop.permute.xlu0 %255
    %257 = vrot.lane.b32.xlu0 %v73, 91
    %v258 = vpop.permute.xlu0 %257
    %259 = vrot.lane.b32.xlu0 %v74, 91
    %v260 = vpop.permute.xlu0 %259
    %261 = vrot.lane.b32.xlu0 %v75, 91
    %v262 = vpop.permute.xlu0 %261
    %263 = vrot.lane.b32.xlu0 %v76, 91
    %v264 = vpop.permute.xlu0 %263
    %265 = vrot.lane.b32.xlu0 %v77, 91
    %v266 = vpop.permute.xlu0 %265
    %vm267 = vcmask 744448
    %v268 = vsel %vm267, %v254, %v256
    %v269 = vsel %vm267, %v256, %v258
    %v270 = vsel %vm267, %v258, %v260
    %v271 = vsel %vm267, %v260, %v262
    %v272 = vsel %vm267, %v262, %v264
    %v273 = vsel %vm267, %v264, %v266
    %281 = vrot.lane.b32.xlu0 %v71, 90
    %v282 = vpop.permute.xlu0 %281
    %283 = vrot.lane.b32.xlu0 %v72, 90
    %v284 = vpop.permute.xlu0 %283
    %285 = vrot.lane.b32.xlu0 %v73, 90
    %v286 = vpop.permute.xlu0 %285
    %287 = vrot.lane.b32.xlu0 %v74, 90
    %v288 = vpop.permute.xlu0 %287
    %289 = vrot.lane.b32.xlu0 %v75, 90
    %v290 = vpop.permute.xlu0 %289
    %291 = vrot.lane.b32.xlu0 %v76, 90
    %v292 = vpop.permute.xlu0 %291
    %293 = vrot.lane.b32.xlu0 %v77, 90
    %v294 = vpop.permute.xlu0 %293
    %vm295 = vcmask 736256
    %v296 = vsel %vm295, %v282, %v284
    %v297 = vsel %vm295, %v284, %v286
    %v298 = vsel %vm295, %v286, %v288
    %v299 = vsel %vm295, %v288, %v290
    %v300 = vsel %vm295, %v290, %v292
    %v301 = vsel %vm295, %v292, %v294
    %vm302 = vcmask 1040384
    %v303 = vsel %vm302, %v71, %v100
    %v304 = vsel %vm302, %v72, %v101
    %v305 = vsel %vm302, %v73, %v102
    %v306 = vsel %vm302, %v74, %v103
    %v307 = vsel %vm302, %v75, %v104
    %v308 = vsel %vm302, %v76, %v105
    %v309 = vsel %vm302, %v77, %v98
    %vm310 = vcmask 1041408
    %v311 = vsel %vm310, %v303, %v128
    %v312 = vsel %vm310, %v304, %v129
    %v313 = vsel %vm310, %v305, %v130
    %v314 = vsel %vm310, %v306, %v131
    %v315 = vsel %vm310, %v307, %v132
    %v316 = vsel %vm310, %v308, %v133
    %v317 = vsel %vm310, %v309, %v126
    %vm318 = vcmask 1042432
    %v319 = vsel %vm318, %v311, %v156
    %v320 = vsel %vm318, %v312, %v157
    %v321 = vsel %vm318, %v313, %v158
    %v322 = vsel %vm318, %v314, %v159
    %v323 = vsel %vm318, %v315, %v160
    %v324 = vsel %vm318, %v316, %v161
    %v325 = vsel %vm318, %v317, %v154
    %vm326 = vcmask 1043456
    %v327 = vsel %vm326, %v319, %v184
    %v328 = vsel %vm326, %v320, %v185
    %v329 = vsel %vm326, %v321, %v186
    %v330 = vsel %vm326, %v322, %v187
    %v331 = vsel %vm326, %v323, %v188
    %v332 = vsel %vm326, %v324, %v189
    %v333 = vsel %vm326, %v325, %v182
    %vm334 = vcmask 1044480
    %v335 = vsel %vm334, %v327, %v212
    %v336 = vsel %vm334, %v328, %v213
    %v337 = vsel %vm334, %v329, %v214
    %v338 = vsel %vm334, %v330, %v215
    %v339 = vsel %vm334, %v331, %v216
    %v340 = vsel %vm334, %v332, %v217
    %v341 = vsel %vm334, %v333, %v210
    %vm342 = vcmask 1045504
    %v343 = vsel %vm342, %v335, %v240
    %v344 = vsel %vm342, %v336, %v241
    %v345 = vsel %vm342, %v337, %v242
    %v346 = vsel %vm342, %v338, %v243
    %v347 = vsel %vm342, %v339, %v244
    %v348 = vsel %vm342, %v340, %v245
    %v349 = vsel %vm342, %v341, %v238
    %vm350 = vcmask 1046528
    %v351 = vsel %vm350, %v343, %v268
    %v352 = vsel %vm350, %v344, %v269
    %v353 = vsel %vm350, %v345, %v270
    %v354 = vsel %vm350, %v346, %v271
    %v355 = vsel %vm350, %v347, %v272
    %v356 = vsel %vm350, %v348, %v273
    %v357 = vsel %vm350, %v349, %v266
    %359 = vset.pattern.permute.xlu0 9
    %360 = vperm.xlu0 %359, %v30
    %v361 = vpop.permute.xlu0 %360
    %364 = vset.pattern.permute.xlu0 9
    %365 = vperm.xlu0 %364, %v31
    %v366 = vpop.permute.xlu0 %365
    %375 = vrot.lane.b32.xlu0 %v351, 123
    %v376 = vpop.permute.xlu0 %375
    %377 = vrot.lane.b32.xlu0 %v352, 123
    %v378 = vpop.permute.xlu0 %377
    %379 = vrot.lane.b32.xlu0 %v353, 123
    %v380 = vpop.permute.xlu0 %379
    %381 = vrot.lane.b32.xlu0 %v354, 123
    %v382 = vpop.permute.xlu0 %381
    %383 = vrot.lane.b32.xlu0 %v355, 123
    %v384 = vpop.permute.xlu0 %383
    %385 = vrot.lane.b32.xlu0 %v356, 123
    %v386 = vpop.permute.xlu0 %385
    %387 = vrot.lane.b32.xlu0 %v357, 123
    %v388 = vpop.permute.xlu0 %387
    %389 = vrot.lane.b32.xlu0 %v296, 123
    %v390 = vpop.permute.xlu0 %389
    %391 = vrot.lane.b32.xlu0 %v297, 123
    %v392 = vpop.permute.xlu0 %391
    %393 = vrot.lane.b32.xlu0 %v298, 123
    %v394 = vpop.permute.xlu0 %393
    %395 = vrot.lane.b32.xlu0 %v299, 123
    %v396 = vpop.permute.xlu0 %395
    %397 = vrot.lane.b32.xlu0 %v300, 123
    %v398 = vpop.permute.xlu0 %397
    %399 = vrot.lane.b32.xlu0 %v301, 123
    %v400 = vpop.permute.xlu0 %399
    %401 = vrot.lane.b32.xlu0 %v294, 123
    %v402 = vpop.permute.xlu0 %401
    %vm403 = vcmask 1006592
    %v404 = vsel %vm403, %v376, %v378
    %v405 = vsel %vm403, %v378, %v380
    %v406 = vsel %vm403, %v380, %v382
    %v407 = vsel %vm403, %v382, %v384
    %v408 = vsel %vm403, %v384, %v386
    %v409 = vsel %vm403, %v386, %v388
    %v410 = vsel %vm403, %v390, %v392
    %v411 = vsel %vm403, %v392, %v394
    %v412 = vsel %vm403, %v394, %v396
    %v413 = vsel %vm403, %v396, %v398
    %v414 = vsel %vm403, %v398, %v400
    %v415 = vsel %vm403, %v400, %v402
    %vm422 = vcmask 72704
    %v423 = vsel %vm422, %v30, 0
    %v425 = vsel %vm422, %v31, 0
    %v427 = vsel %vm302, %v410, 0
    %v429 = vsel %vm302, %v411, 0
    %v431 = vsel %vm302, %v412, 0
    %v433 = vsel %vm302, %v413, 0
    %v435 = vsel %vm302, %v414, 0
    %v437 = vsel %vm302, %v415, 0
    %439 = vmatpush.msra.mxu0 0.0
    %440 = vmatpush.msra.mxu0 0.0
    %441 = vmatpush.msra.mxu0 0.0
    %442 = vmatpush.msra.mxu0 0.0
    %443 = vmatpush.msra.mxu0 0.0
    %444 = vmatpush.msra.mxu0 0.0
    %445 = vmatpush.msra.mxu0 0.0
    %446 = vmatpush.msra.mxu0 0.0
    %447 = vmatpush.msra.mxu0 0.0
    %448 = vmatpush.msra.mxu0 0.0
    %449 = vmatpush.msra.mxu0 0.0
    %450 = vmatpush.msra.mxu0 0.0
    %451 = vmatpush.msra.mxu0 0.0
    %452 = vmatpush.msra.mxu0 0.0
    %453 = vmatpush.msra.mxu0 %v427
    %454 = vmatpush.msra.mxu0 %v404
    %455 = vmatmul.f32.gmra.mxu0 %v423
    %v456 = vpop.f32.mrf.mxu0
    %v457 = vadd.f32 %v361, %v456
    %458 = vmatmul.f32.gmra.mxu0 %v425
    %v459 = vpop.f32.mrf.mxu0
    %v460 = vadd.f32 %v366, %v459
    %461 = vdwg.mxu0
    %462 = vmatpush.msra.mxu0 0.0
    %463 = vmatpush.msra.mxu0 0.0
    %464 = vmatpush.msra.mxu0 0.0
    %465 = vmatpush.msra.mxu0 0.0
    %466 = vmatpush.msra.mxu0 0.0
    %467 = vmatpush.msra.mxu0 0.0
    %468 = vmatpush.msra.mxu0 0.0
    %469 = vmatpush.msra.mxu0 0.0
    %470 = vmatpush.msra.mxu0 0.0
    %471 = vmatpush.msra.mxu0 0.0
    %472 = vmatpush.msra.mxu0 0.0
    %473 = vmatpush.msra.mxu0 0.0
    %474 = vmatpush.msra.mxu0 0.0
    %475 = vmatpush.msra.mxu0 0.0
    %476 = vmatpush.msra.mxu0 %v429
    %477 = vmatpush.msra.mxu0 %v405
    %478 = vmatmul.f32.gmra.mxu0 %v423
    %v479 = vpop.f32.mrf.mxu0
    %v480 = vadd.f32 %v361, %v479
    %481 = vmatmul.f32.gmra.mxu0 %v425
    %v482 = vpop.f32.mrf.mxu0
    %v483 = vadd.f32 %v366, %v482
    %484 = vdwg.mxu0
    %485 = vmatpush.msra.mxu0 0.0
    %486 = vmatpush.msra.mxu0 0.0
    %487 = vmatpush.msra.mxu0 0.0
    %488 = vmatpush.msra.mxu0 0.0
    %489 = vmatpush.msra.mxu0 0.0
    %490 = vmatpush.msra.mxu0 0.0
    %491 = vmatpush.msra.mxu0 0.0
    %492 = vmatpush.msra.mxu0 0.0
    %493 = vmatpush.msra.mxu0 0.0
    %494 = vmatpush.msra.mxu0 0.0
    %495 = vmatpush.msra.mxu0 0.0
    %496 = vmatpush.msra.mxu0 0.0
    %497 = vmatpush.msra.mxu0 0.0
    %498 = vmatpush.msra.mxu0 0.0
    %499 = vmatpush.msra.mxu0 %v431
    %500 = vmatpush.msra.mxu0 %v406
    %501 = vmatmul.f32.gmra.mxu0 %v423
    %v502 = vpop.f32.mrf.mxu0
    %v503 = vadd.f32 %v361, %v502
    %504 = vmatmul.f32.gmra.mxu0 %v425
    %v505 = vpop.f32.mrf.mxu0
    %v506 = vadd.f32 %v366, %v505
    %507 = vdwg.mxu0
    %508 = vmatpush.msra.mxu0 0.0
    %509 = vmatpush.msra.mxu0 0.0
    %510 = vmatpush.msra.mxu0 0.0
    %511 = vmatpush.msra.mxu0 0.0
    %512 = vmatpush.msra.mxu0 0.0
    %513 = vmatpush.msra.mxu0 0.0
    %514 = vmatpush.msra.mxu0 0.0
    %515 = vmatpush.msra.mxu0 0.0
    %516 = vmatpush.msra.mxu0 0.0
    %517 = vmatpush.msra.mxu0 0.0
    %518 = vmatpush.msra.mxu0 0.0
    %519 = vmatpush.msra.mxu0 0.0
    %520 = vmatpush.msra.mxu0 0.0
    %521 = vmatpush.msra.mxu0 0.0
    %522 = vmatpush.msra.mxu0 %v433
    %523 = vmatpush.msra.mxu0 %v407
    %524 = vmatmul.f32.gmra.mxu0 %v423
    %v525 = vpop.f32.mrf.mxu0
    %v526 = vadd.f32 %v361, %v525
    %527 = vmatmul.f32.gmra.mxu0 %v425
    %v528 = vpop.f32.mrf.mxu0
    %v529 = vadd.f32 %v366, %v528
    %530 = vdwg.mxu0
    %531 = vmatpush.msra.mxu0 0.0
    %532 = vmatpush.msra.mxu0 0.0
    %533 = vmatpush.msra.mxu0 0.0
    %534 = vmatpush.msra.mxu0 0.0
    %535 = vmatpush.msra.mxu0 0.0
    %536 = vmatpush.msra.mxu0 0.0
    %537 = vmatpush.msra.mxu0 0.0
    %538 = vmatpush.msra.mxu0 0.0
    %539 = vmatpush.msra.mxu0 0.0
    %540 = vmatpush.msra.mxu0 0.0
    %541 = vmatpush.msra.mxu0 0.0
    %542 = vmatpush.msra.mxu0 0.0
    %543 = vmatpush.msra.mxu0 0.0
    %544 = vmatpush.msra.mxu0 0.0
    %545 = vmatpush.msra.mxu0 %v435
    %546 = vmatpush.msra.mxu0 %v408
    %547 = vmatmul.f32.gmra.mxu0 %v423
    %v548 = vpop.f32.mrf.mxu0
    %v549 = vadd.f32 %v361, %v548
    %550 = vmatmul.f32.gmra.mxu0 %v425
    %v551 = vpop.f32.mrf.mxu0
    %v552 = vadd.f32 %v366, %v551
    %553 = vdwg.mxu0
    %554 = vmatpush.msra.mxu0 0.0
    %555 = vmatpush.msra.mxu0 0.0
    %556 = vmatpush.msra.mxu0 0.0
    %557 = vmatpush.msra.mxu0 0.0
    %558 = vmatpush.msra.mxu0 0.0
    %559 = vmatpush.msra.mxu0 0.0
    %560 = vmatpush.msra.mxu0 0.0
    %561 = vmatpush.msra.mxu0 0.0
    %562 = vmatpush.msra.mxu0 0.0
    %563 = vmatpush.msra.mxu0 0.0
    %564 = vmatpush.msra.mxu0 0.0
    %565 = vmatpush.msra.mxu0 0.0
    %566 = vmatpush.msra.mxu0 0.0
    %567 = vmatpush.msra.mxu0 0.0
    %568 = vmatpush.msra.mxu0 %v437
    %569 = vmatpush.msra.mxu0 %v409
    %570 = vmatmul.f32.gmra.mxu0 %v423
    %v571 = vpop.f32.mrf.mxu0
    %v572 = vadd.f32 %v361, %v571
    %573 = vmatmul.f32.gmra.mxu0 %v425
    %v574 = vpop.f32.mrf.mxu0
    %v575 = vadd.f32 %v366, %v574
    %576 = vdwg.mxu0
    %vm577 = vcmp.gt.f32.partialorder %v457, 0.0
    %vm578 = vcmp.gt.f32.partialorder %v480, 0.0
    %vm579 = vcmp.gt.f32.partialorder %v503, 0.0
    %vm580 = vcmp.gt.f32.partialorder %v526, 0.0
    %vm581 = vcmp.gt.f32.partialorder %v549, 0.0
    %vm582 = vcmp.gt.f32.partialorder %v572, 0.0
    %vm583 = vcmp.gt.f32.partialorder %v460, 0.0
    %vm584 = vcmp.gt.f32.partialorder %v483, 0.0
    %vm585 = vcmp.gt.f32.partialorder %v506, 0.0
    %vm586 = vcmp.gt.f32.partialorder %v529, 0.0
    %vm587 = vcmp.gt.f32.partialorder %v552, 0.0
    %vm588 = vcmp.gt.f32.partialorder %v575, 0.0
    %v589 = vmul.f32 %v457, 0.01
    %v590 = vmul.f32 %v480, 0.01
    %v591 = vmul.f32 %v503, 0.01
    %v592 = vmul.f32 %v526, 0.01
    %v593 = vmul.f32 %v549, 0.01
    %v594 = vmul.f32 %v572, 0.01
    %v595 = vmul.f32 %v460, 0.01
    %v596 = vmul.f32 %v483, 0.01
    %v597 = vmul.f32 %v506, 0.01
    %v598 = vmul.f32 %v529, 0.01
    %v599 = vmul.f32 %v552, 0.01
    %v600 = vmul.f32 %v575, 0.01
    %v601 = vsel %vm577, %v457, %v589
    %v602 = vsel %vm578, %v480, %v590
    %v603 = vsel %vm579, %v503, %v591
    %v604 = vsel %vm580, %v526, %v592
    %v605 = vsel %vm581, %v549, %v593
    %v606 = vsel %vm582, %v572, %v594
    %v607 = vsel %vm583, %v460, %v595
    %v608 = vsel %vm584, %v483, %v596
    %v609 = vsel %vm585, %v506, %v597
    %v610 = vsel %vm586, %v529, %v598
    %v611 = vsel %vm587, %v552, %v599
    %v612 = vsel %vm588, %v575, %v600
    %v614 = vperm.slane %v68, 0
    %v615 = vperm.slane %v68, 1
    %v616 = vperm.slane %v68, 2
    %v617 = vperm.slane %v68, 3
    %v618 = vperm.slane %v68, 4
    %v619 = vperm.slane %v68, 5
    %v626 = vmul.f32 %v601, %v614
    %v627 = vmul.f32 %v602, %v615
    %v628 = vmul.f32 %v603, %v616
    %v629 = vmul.f32 %v604, %v617
    %v630 = vmul.f32 %v605, %v618
    %v631 = vmul.f32 %v606, %v619
    %v632 = vmul.f32 %v607, %v614
    %v633 = vmul.f32 %v608, %v615
    %v634 = vmul.f32 %v609, %v616
    %v635 = vmul.f32 %v610, %v617
    %v636 = vmul.f32 %v611, %v618
    %v637 = vmul.f32 %v612, %v619
    %650 = vrot.lane.b32.xlu0 %v626, 127
    %v651 = vpop.permute.xlu0 %650
    %652 = vrot.lane.b32.xlu0 %v627, 127
    %v653 = vpop.permute.xlu0 %652
    %654 = vrot.lane.b32.xlu0 %v628, 127
    %v655 = vpop.permute.xlu0 %654
    %656 = vrot.lane.b32.xlu0 %v629, 127
    %v657 = vpop.permute.xlu0 %656
    %658 = vrot.lane.b32.xlu0 %v630, 127
    %v659 = vpop.permute.xlu0 %658
    %660 = vrot.lane.b32.xlu0 %v631, 127
    %v661 = vpop.permute.xlu0 %660
    %662 = vrot.lane.b32.xlu0 %v632, 127
    %v663 = vpop.permute.xlu0 %662
    %664 = vrot.lane.b32.xlu0 %v633, 127
    %v665 = vpop.permute.xlu0 %664
    %666 = vrot.lane.b32.xlu0 %v634, 127
    %v667 = vpop.permute.xlu0 %666
    %668 = vrot.lane.b32.xlu0 %v635, 127
    %v669 = vpop.permute.xlu0 %668
    %670 = vrot.lane.b32.xlu0 %v636, 127
    %v671 = vpop.permute.xlu0 %670
    %672 = vrot.lane.b32.xlu0 %v637, 127
    %v673 = vpop.permute.xlu0 %672
    %v674 = vsel %vm99, %v651, %v653
    %v675 = vsel %vm99, %v653, %v655
    %v676 = vsel %vm99, %v655, %v657
    %v677 = vsel %vm99, %v657, %v659
    %v678 = vsel %vm99, %v659, %v661
    %v679 = vsel %vm99, %v663, %v665
    %v680 = vsel %vm99, %v665, %v667
    %v681 = vsel %vm99, %v667, %v669
    %v682 = vsel %vm99, %v669, %v671
    %v683 = vsel %vm99, %v671, %v673
    %684 = vrot.lane.b32.xlu0 %v626, 126
    %v685 = vpop.permute.xlu0 %684
    %686 = vrot.lane.b32.xlu0 %v627, 126
    %v687 = vpop.permute.xlu0 %686
    %688 = vrot.lane.b32.xlu0 %v628, 126
    %v689 = vpop.permute.xlu0 %688
    %690 = vrot.lane.b32.xlu0 %v629, 126
    %v691 = vpop.permute.xlu0 %690
    %692 = vrot.lane.b32.xlu0 %v630, 126
    %v693 = vpop.permute.xlu0 %692
    %694 = vrot.lane.b32.xlu0 %v631, 126
    %v695 = vpop.permute.xlu0 %694
    %696 = vrot.lane.b32.xlu0 %v632, 126
    %v697 = vpop.permute.xlu0 %696
    %698 = vrot.lane.b32.xlu0 %v633, 126
    %v699 = vpop.permute.xlu0 %698
    %700 = vrot.lane.b32.xlu0 %v634, 126
    %v701 = vpop.permute.xlu0 %700
    %702 = vrot.lane.b32.xlu0 %v635, 126
    %v703 = vpop.permute.xlu0 %702
    %704 = vrot.lane.b32.xlu0 %v636, 126
    %v705 = vpop.permute.xlu0 %704
    %706 = vrot.lane.b32.xlu0 %v637, 126
    %v707 = vpop.permute.xlu0 %706
    %v708 = vsel %vm127, %v685, %v687
    %v709 = vsel %vm127, %v687, %v689
    %v710 = vsel %vm127, %v689, %v691
    %v711 = vsel %vm127, %v691, %v693
    %v712 = vsel %vm127, %v693, %v695
    %v713 = vsel %vm127, %v697, %v699
    %v714 = vsel %vm127, %v699, %v701
    %v715 = vsel %vm127, %v701, %v703
    %v716 = vsel %vm127, %v703, %v705
    %v717 = vsel %vm127, %v705, %v707
    %718 = vrot.lane.b32.xlu0 %v626, 110
    %v719 = vpop.permute.xlu0 %718
    %720 = vrot.lane.b32.xlu0 %v627, 110
    %v721 = vpop.permute.xlu0 %720
    %722 = vrot.lane.b32.xlu0 %v628, 110
    %v723 = vpop.permute.xlu0 %722
    %724 = vrot.lane.b32.xlu0 %v629, 110
    %v725 = vpop.permute.xlu0 %724
    %726 = vrot.lane.b32.xlu0 %v630, 110
    %v727 = vpop.permute.xlu0 %726
    %728 = vrot.lane.b32.xlu0 %v631, 110
    %v729 = vpop.permute.xlu0 %728
    %730 = vrot.lane.b32.xlu0 %v632, 110
    %v731 = vpop.permute.xlu0 %730
    %732 = vrot.lane.b32.xlu0 %v633, 110
    %v733 = vpop.permute.xlu0 %732
    %734 = vrot.lane.b32.xlu0 %v634, 110
    %v735 = vpop.permute.xlu0 %734
    %736 = vrot.lane.b32.xlu0 %v635, 110
    %v737 = vpop.permute.xlu0 %736
    %738 = vrot.lane.b32.xlu0 %v636, 110
    %v739 = vpop.permute.xlu0 %738
    %740 = vrot.lane.b32.xlu0 %v637, 110
    %v741 = vpop.permute.xlu0 %740
    %v742 = vsel %vm155, %v719, %v721
    %v743 = vsel %vm155, %v721, %v723
    %v744 = vsel %vm155, %v723, %v725
    %v745 = vsel %vm155, %v725, %v727
    %v746 = vsel %vm155, %v727, %v729
    %v747 = vsel %vm155, %v731, %v733
    %v748 = vsel %vm155, %v733, %v735
    %v749 = vsel %vm155, %v735, %v737
    %v750 = vsel %vm155, %v737, %v739
    %v751 = vsel %vm155, %v739, %v741
    %752 = vrot.lane.b32.xlu0 %v626, 109
    %v753 = vpop.permute.xlu0 %752
    %754 = vrot.lane.b32.xlu0 %v627, 109
    %v755 = vpop.permute.xlu0 %754
    %756 = vrot.lane.b32.xlu0 %v628, 109
    %v757 = vpop.permute.xlu0 %756
    %758 = vrot.lane.b32.xlu0 %v629, 109
    %v759 = vpop.permute.xlu0 %758
    %760 = vrot.lane.b32.xlu0 %v630, 109
    %v761 = vpop.permute.xlu0 %760
    %762 = vrot.lane.b32.xlu0 %v631, 109
    %v763 = vpop.permute.xlu0 %762
    %764 = vrot.lane.b32.xlu0 %v632, 109
    %v765 = vpop.permute.xlu0 %764
    %766 = vrot.lane.b32.xlu0 %v633, 109
    %v767 = vpop.permute.xlu0 %766
    %768 = vrot.lane.b32.xlu0 %v634, 109
    %v769 = vpop.permute.xlu0 %768
    %770 = vrot.lane.b32.xlu0 %v635, 109
    %v771 = vpop.permute.xlu0 %770
    %772 = vrot.lane.b32.xlu0 %v636, 109
    %v773 = vpop.permute.xlu0 %772
    %774 = vrot.lane.b32.xlu0 %v637, 109
    %v775 = vpop.permute.xlu0 %774
    %v776 = vsel %vm183, %v753, %v755
    %v777 = vsel %vm183, %v755, %v757
    %v778 = vsel %vm183, %v757, %v759
    %v779 = vsel %vm183, %v759, %v761
    %v780 = vsel %vm183, %v761, %v763
    %v781 = vsel %vm183, %v765, %v767
    %v782 = vsel %vm183, %v767, %v769
    %v783 = vsel %vm183, %v769, %v771
    %v784 = vsel %vm183, %v771, %v773
    %v785 = vsel %vm183, %v773, %v775
    %786 = vrot.lane.b32.xlu0 %v626, 108
    %v787 = vpop.permute.xlu0 %786
    %788 = vrot.lane.b32.xlu0 %v627, 108
    %v789 = vpop.permute.xlu0 %788
    %790 = vrot.lane.b32.xlu0 %v628, 108
    %v791 = vpop.permute.xlu0 %790
    %792 = vrot.lane.b32.xlu0 %v629, 108
    %v793 = vpop.permute.xlu0 %792
    %794 = vrot.lane.b32.xlu0 %v630, 108
    %v795 = vpop.permute.xlu0 %794
    %796 = vrot.lane.b32.xlu0 %v631, 108
    %v797 = vpop.permute.xlu0 %796
    %798 = vrot.lane.b32.xlu0 %v632, 108
    %v799 = vpop.permute.xlu0 %798
    %800 = vrot.lane.b32.xlu0 %v633, 108
    %v801 = vpop.permute.xlu0 %800
    %802 = vrot.lane.b32.xlu0 %v634, 108
    %v803 = vpop.permute.xlu0 %802
    %804 = vrot.lane.b32.xlu0 %v635, 108
    %v805 = vpop.permute.xlu0 %804
    %806 = vrot.lane.b32.xlu0 %v636, 108
    %v807 = vpop.permute.xlu0 %806
    %808 = vrot.lane.b32.xlu0 %v637, 108
    %v809 = vpop.permute.xlu0 %808
    %v810 = vsel %vm211, %v787, %v789
    %v811 = vsel %vm211, %v789, %v791
    %v812 = vsel %vm211, %v791, %v793
    %v813 = vsel %vm211, %v793, %v795
    %v814 = vsel %vm211, %v795, %v797
    %v815 = vsel %vm211, %v799, %v801
    %v816 = vsel %vm211, %v801, %v803
    %v817 = vsel %vm211, %v803, %v805
    %v818 = vsel %vm211, %v805, %v807
    %v819 = vsel %vm211, %v807, %v809
    %820 = vrot.lane.b32.xlu0 %v626, 92
    %v821 = vpop.permute.xlu0 %820
    %822 = vrot.lane.b32.xlu0 %v627, 92
    %v823 = vpop.permute.xlu0 %822
    %824 = vrot.lane.b32.xlu0 %v628, 92
    %v825 = vpop.permute.xlu0 %824
    %826 = vrot.lane.b32.xlu0 %v629, 92
    %v827 = vpop.permute.xlu0 %826
    %828 = vrot.lane.b32.xlu0 %v630, 92
    %v829 = vpop.permute.xlu0 %828
    %830 = vrot.lane.b32.xlu0 %v631, 92
    %v831 = vpop.permute.xlu0 %830
    %832 = vrot.lane.b32.xlu0 %v632, 92
    %v833 = vpop.permute.xlu0 %832
    %834 = vrot.lane.b32.xlu0 %v633, 92
    %v835 = vpop.permute.xlu0 %834
    %836 = vrot.lane.b32.xlu0 %v634, 92
    %v837 = vpop.permute.xlu0 %836
    %838 = vrot.lane.b32.xlu0 %v635, 92
    %v839 = vpop.permute.xlu0 %838
    %840 = vrot.lane.b32.xlu0 %v636, 92
    %v841 = vpop.permute.xlu0 %840
    %842 = vrot.lane.b32.xlu0 %v637, 92
    %v843 = vpop.permute.xlu0 %842
    %v844 = vsel %vm239, %v821, %v823
    %v845 = vsel %vm239, %v823, %v825
    %v846 = vsel %vm239, %v825, %v827
    %v847 = vsel %vm239, %v827, %v829
    %v848 = vsel %vm239, %v829, %v831
    %v849 = vsel %vm239, %v833, %v835
    %v850 = vsel %vm239, %v835, %v837
    %v851 = vsel %vm239, %v837, %v839
    %v852 = vsel %vm239, %v839, %v841
    %v853 = vsel %vm239, %v841, %v843
    %854 = vrot.lane.b32.xlu0 %v626, 91
    %v855 = vpop.permute.xlu0 %854
    %856 = vrot.lane.b32.xlu0 %v627, 91
    %v857 = vpop.permute.xlu0 %856
    %858 = vrot.lane.b32.xlu0 %v628, 91
    %v859 = vpop.permute.xlu0 %858
    %860 = vrot.lane.b32.xlu0 %v629, 91
    %v861 = vpop.permute.xlu0 %860
    %862 = vrot.lane.b32.xlu0 %v630, 91
    %v863 = vpop.permute.xlu0 %862
    %864 = vrot.lane.b32.xlu0 %v631, 91
    %v865 = vpop.permute.xlu0 %864
    %866 = vrot.lane.b32.xlu0 %v632, 91
    %v867 = vpop.permute.xlu0 %866
    %868 = vrot.lane.b32.xlu0 %v633, 91
    %v869 = vpop.permute.xlu0 %868
    %870 = vrot.lane.b32.xlu0 %v634, 91
    %v871 = vpop.permute.xlu0 %870
    %872 = vrot.lane.b32.xlu0 %v635, 91
    %v873 = vpop.permute.xlu0 %872
    %874 = vrot.lane.b32.xlu0 %v636, 91
    %v875 = vpop.permute.xlu0 %874
    %876 = vrot.lane.b32.xlu0 %v637, 91
    %v877 = vpop.permute.xlu0 %876
    %v878 = vsel %vm267, %v855, %v857
    %v879 = vsel %vm267, %v857, %v859
    %v880 = vsel %vm267, %v859, %v861
    %v881 = vsel %vm267, %v861, %v863
    %v882 = vsel %vm267, %v863, %v865
    %v883 = vsel %vm267, %v867, %v869
    %v884 = vsel %vm267, %v869, %v871
    %v885 = vsel %vm267, %v871, %v873
    %v886 = vsel %vm267, %v873, %v875
    %v887 = vsel %vm267, %v875, %v877
    %888 = vrot.lane.b32.xlu0 %v626, 90
    %v889 = vpop.permute.xlu0 %888
    %890 = vrot.lane.b32.xlu0 %v627, 90
    %v891 = vpop.permute.xlu0 %890
    %892 = vrot.lane.b32.xlu0 %v628, 90
    %v893 = vpop.permute.xlu0 %892
    %894 = vrot.lane.b32.xlu0 %v629, 90
    %v895 = vpop.permute.xlu0 %894
    %896 = vrot.lane.b32.xlu0 %v630, 90
    %v897 = vpop.permute.xlu0 %896
    %898 = vrot.lane.b32.xlu0 %v631, 90
    %v899 = vpop.permute.xlu0 %898
    %900 = vrot.lane.b32.xlu0 %v632, 90
    %v901 = vpop.permute.xlu0 %900
    %902 = vrot.lane.b32.xlu0 %v633, 90
    %v903 = vpop.permute.xlu0 %902
    %904 = vrot.lane.b32.xlu0 %v634, 90
    %v905 = vpop.permute.xlu0 %904
    %906 = vrot.lane.b32.xlu0 %v635, 90
    %v907 = vpop.permute.xlu0 %906
    %908 = vrot.lane.b32.xlu0 %v636, 90
    %v909 = vpop.permute.xlu0 %908
    %910 = vrot.lane.b32.xlu0 %v637, 90
    %v911 = vpop.permute.xlu0 %910
    %v912 = vsel %vm295, %v889, %v891
    %v913 = vsel %vm295, %v891, %v893
    %v914 = vsel %vm295, %v893, %v895
    %v915 = vsel %vm295, %v895, %v897
    %v916 = vsel %vm295, %v897, %v899
    %v917 = vsel %vm295, %v901, %v903
    %v918 = vsel %vm295, %v903, %v905
    %v919 = vsel %vm295, %v905, %v907
    %v920 = vsel %vm295, %v907, %v909
    %v921 = vsel %vm295, %v909, %v911
    %923 = vset.pattern.permute.xlu0 16
    %924 = vperm.xlu0 %923, %v33
    %v925 = vpop.permute.xlu0 %924
    %928 = vset.pattern.permute.xlu0 16
    %929 = vperm.xlu0 %928, %v35
    %v930 = vpop.permute.xlu0 %929
    %933 = vset.pattern.permute.xlu0 16
    %934 = vperm.xlu0 %933, %v37
    %v935 = vpop.permute.xlu0 %934
    %938 = vset.pattern.permute.xlu0 16
    %939 = vperm.xlu0 %938, %v39
    %v940 = vpop.permute.xlu0 %939
    %943 = vset.pattern.permute.xlu0 16
    %944 = vperm.xlu0 %943, %v41
    %v945 = vpop.permute.xlu0 %944
    %948 = vset.pattern.permute.xlu0 16
    %949 = vperm.xlu0 %948, %v43
    %v950 = vpop.permute.xlu0 %949
    %953 = vset.pattern.permute.xlu0 16
    %954 = vperm.xlu0 %953, %v45
    %v955 = vpop.permute.xlu0 %954
    %958 = vset.pattern.permute.xlu0 16
    %959 = vperm.xlu0 %958, %v47
    %v960 = vpop.permute.xlu0 %959
    %962 = vrot.lane.b32.xlu0 %v626, 123
    %v963 = vpop.permute.xlu0 %962
    %964 = vrot.lane.b32.xlu0 %v627, 123
    %v965 = vpop.permute.xlu0 %964
    %966 = vrot.lane.b32.xlu0 %v628, 123
    %v967 = vpop.permute.xlu0 %966
    %968 = vrot.lane.b32.xlu0 %v629, 123
    %v969 = vpop.permute.xlu0 %968
    %970 = vrot.lane.b32.xlu0 %v630, 123
    %v971 = vpop.permute.xlu0 %970
    %972 = vrot.lane.b32.xlu0 %v631, 123
    %v973 = vpop.permute.xlu0 %972
    %974 = vrot.lane.b32.xlu0 %v632, 123
    %v975 = vpop.permute.xlu0 %974
    %976 = vrot.lane.b32.xlu0 %v633, 123
    %v977 = vpop.permute.xlu0 %976
    %978 = vrot.lane.b32.xlu0 %v634, 123
    %v979 = vpop.permute.xlu0 %978
    %980 = vrot.lane.b32.xlu0 %v635, 123
    %v981 = vpop.permute.xlu0 %980
    %982 = vrot.lane.b32.xlu0 %v636, 123
    %v983 = vpop.permute.xlu0 %982
    %984 = vrot.lane.b32.xlu0 %v637, 123
    %v985 = vpop.permute.xlu0 %984
    %986 = vrot.lane.b32.xlu0 %v674, 123
    %v987 = vpop.permute.xlu0 %986
    %988 = vrot.lane.b32.xlu0 %v675, 123
    %v989 = vpop.permute.xlu0 %988
    %990 = vrot.lane.b32.xlu0 %v676, 123
    %v991 = vpop.permute.xlu0 %990
    %992 = vrot.lane.b32.xlu0 %v677, 123
    %v993 = vpop.permute.xlu0 %992
    %994 = vrot.lane.b32.xlu0 %v678, 123
    %v995 = vpop.permute.xlu0 %994
    %996 = vrot.lane.b32.xlu0 %v661, 123
    %v997 = vpop.permute.xlu0 %996
    %998 = vrot.lane.b32.xlu0 %v679, 123
    %v999 = vpop.permute.xlu0 %998
    %1000 = vrot.lane.b32.xlu0 %v680, 123
    %v1001 = vpop.permute.xlu0 %1000
    %1002 = vrot.lane.b32.xlu0 %v681, 123
    %v1003 = vpop.permute.xlu0 %1002
    %1004 = vrot.lane.b32.xlu0 %v682, 123
    %v1005 = vpop.permute.xlu0 %1004
    %1006 = vrot.lane.b32.xlu0 %v683, 123
    %v1007 = vpop.permute.xlu0 %1006
    %1008 = vrot.lane.b32.xlu0 %v673, 123
    %v1009 = vpop.permute.xlu0 %1008
    %1010 = vrot.lane.b32.xlu0 %v708, 123
    %v1011 = vpop.permute.xlu0 %1010
    %1012 = vrot.lane.b32.xlu0 %v709, 123
    %v1013 = vpop.permute.xlu0 %1012
    %1014 = vrot.lane.b32.xlu0 %v710, 123
    %v1015 = vpop.permute.xlu0 %1014
    %1016 = vrot.lane.b32.xlu0 %v711, 123
    %v1017 = vpop.permute.xlu0 %1016
    %1018 = vrot.lane.b32.xlu0 %v712, 123
    %v1019 = vpop.permute.xlu0 %1018
    %1020 = vrot.lane.b32.xlu0 %v695, 123
    %v1021 = vpop.permute.xlu0 %1020
    %1022 = vrot.lane.b32.xlu0 %v713, 123
    %v1023 = vpop.permute.xlu0 %1022
    %1024 = vrot.lane.b32.xlu0 %v714, 123
    %v1025 = vpop.permute.xlu0 %1024
    %1026 = vrot.lane.b32.xlu0 %v715, 123
    %v1027 = vpop.permute.xlu0 %1026
    %1028 = vrot.lane.b32.xlu0 %v716, 123
    %v1029 = vpop.permute.xlu0 %1028
    %1030 = vrot.lane.b32.xlu0 %v717, 123
    %v1031 = vpop.permute.xlu0 %1030
    %1032 = vrot.lane.b32.xlu0 %v707, 123
    %v1033 = vpop.permute.xlu0 %1032
    %1034 = vrot.lane.b32.xlu0 %v742, 123
    %v1035 = vpop.permute.xlu0 %1034
    %1036 = vrot.lane.b32.xlu0 %v743, 123
    %v1037 = vpop.permute.xlu0 %1036
    %1038 = vrot.lane.b32.xlu0 %v744, 123
    %v1039 = vpop.permute.xlu0 %1038
    %1040 = vrot.lane.b32.xlu0 %v745, 123
    %v1041 = vpop.permute.xlu0 %1040
    %1042 = vrot.lane.b32.xlu0 %v746, 123
    %v1043 = vpop.permute.xlu0 %1042
    %1044 = vrot.lane.b32.xlu0 %v729, 123
    %v1045 = vpop.permute.xlu0 %1044
    %1046 = vrot.lane.b32.xlu0 %v747, 123
    %v1047 = vpop.permute.xlu0 %1046
    %1048 = vrot.lane.b32.xlu0 %v748, 123
    %v1049 = vpop.permute.xlu0 %1048
    %1050 = vrot.lane.b32.xlu0 %v749, 123
    %v1051 = vpop.permute.xlu0 %1050
    %1052 = vrot.lane.b32.xlu0 %v750, 123
    %v1053 = vpop.permute.xlu0 %1052
    %1054 = vrot.lane.b32.xlu0 %v751, 123
    %v1055 = vpop.permute.xlu0 %1054
    %1056 = vrot.lane.b32.xlu0 %v741, 123
    %v1057 = vpop.permute.xlu0 %1056
    %1058 = vrot.lane.b32.xlu0 %v776, 123
    %v1059 = vpop.permute.xlu0 %1058
    %1060 = vrot.lane.b32.xlu0 %v777, 123
    %v1061 = vpop.permute.xlu0 %1060
    %1062 = vrot.lane.b32.xlu0 %v778, 123
    %v1063 = vpop.permute.xlu0 %1062
    %1064 = vrot.lane.b32.xlu0 %v779, 123
    %v1065 = vpop.permute.xlu0 %1064
    %1066 = vrot.lane.b32.xlu0 %v780, 123
    %v1067 = vpop.permute.xlu0 %1066
    %1068 = vrot.lane.b32.xlu0 %v763, 123
    %v1069 = vpop.permute.xlu0 %1068
    %1070 = vrot.lane.b32.xlu0 %v781, 123
    %v1071 = vpop.permute.xlu0 %1070
    %1072 = vrot.lane.b32.xlu0 %v782, 123
    %v1073 = vpop.permute.xlu0 %1072
    %1074 = vrot.lane.b32.xlu0 %v783, 123
    %v1075 = vpop.permute.xlu0 %1074
    %1076 = vrot.lane.b32.xlu0 %v784, 123
    %v1077 = vpop.permute.xlu0 %1076
    %1078 = vrot.lane.b32.xlu0 %v785, 123
    %v1079 = vpop.permute.xlu0 %1078
    %1080 = vrot.lane.b32.xlu0 %v775, 123
    %v1081 = vpop.permute.xlu0 %1080
    %1082 = vrot.lane.b32.xlu0 %v810, 123
    %v1083 = vpop.permute.xlu0 %1082
    %1084 = vrot.lane.b32.xlu0 %v811, 123
    %v1085 = vpop.permute.xlu0 %1084
    %1086 = vrot.lane.b32.xlu0 %v812, 123
    %v1087 = vpop.permute.xlu0 %1086
    %1088 = vrot.lane.b32.xlu0 %v813, 123
    %v1089 = vpop.permute.xlu0 %1088
    %1090 = vrot.lane.b32.xlu0 %v814, 123
    %v1091 = vpop.permute.xlu0 %1090
    %1092 = vrot.lane.b32.xlu0 %v797, 123
    %v1093 = vpop.permute.xlu0 %1092
    %1094 = vrot.lane.b32.xlu0 %v815, 123
    %v1095 = vpop.permute.xlu0 %1094
    %1096 = vrot.lane.b32.xlu0 %v816, 123
    %v1097 = vpop.permute.xlu0 %1096
    %1098 = vrot.lane.b32.xlu0 %v817, 123
    %v1099 = vpop.permute.xlu0 %1098
    %1100 = vrot.lane.b32.xlu0 %v818, 123
    %v1101 = vpop.permute.xlu0 %1100
    %1102 = vrot.lane.b32.xlu0 %v819, 123
    %v1103 = vpop.permute.xlu0 %1102
    %1104 = vrot.lane.b32.xlu0 %v809, 123
    %v1105 = vpop.permute.xlu0 %1104
    %1106 = vrot.lane.b32.xlu0 %v844, 123
    %v1107 = vpop.permute.xlu0 %1106
    %1108 = vrot.lane.b32.xlu0 %v845, 123
    %v1109 = vpop.permute.xlu0 %1108
    %1110 = vrot.lane.b32.xlu0 %v846, 123
    %v1111 = vpop.permute.xlu0 %1110
    %1112 = vrot.lane.b32.xlu0 %v847, 123
    %v1113 = vpop.permute.xlu0 %1112
    %1114 = vrot.lane.b32.xlu0 %v848, 123
    %v1115 = vpop.permute.xlu0 %1114
    %1116 = vrot.lane.b32.xlu0 %v831, 123
    %v1117 = vpop.permute.xlu0 %1116
    %1118 = vrot.lane.b32.xlu0 %v849, 123
    %v1119 = vpop.permute.xlu0 %1118
    %1120 = vrot.lane.b32.xlu0 %v850, 123
    %v1121 = vpop.permute.xlu0 %1120
    %1122 = vrot.lane.b32.xlu0 %v851, 123
    %v1123 = vpop.permute.xlu0 %1122
    %1124 = vrot.lane.b32.xlu0 %v852, 123
    %v1125 = vpop.permute.xlu0 %1124
    %1126 = vrot.lane.b32.xlu0 %v853, 123
    %v1127 = vpop.permute.xlu0 %1126
    %1128 = vrot.lane.b32.xlu0 %v843, 123
    %v1129 = vpop.permute.xlu0 %1128
    %1130 = vrot.lane.b32.xlu0 %v878, 123
    %v1131 = vpop.permute.xlu0 %1130
    %1132 = vrot.lane.b32.xlu0 %v879, 123
    %v1133 = vpop.permute.xlu0 %1132
    %1134 = vrot.lane.b32.xlu0 %v880, 123
    %v1135 = vpop.permute.xlu0 %1134
    %1136 = vrot.lane.b32.xlu0 %v881, 123
    %v1137 = vpop.permute.xlu0 %1136
    %1138 = vrot.lane.b32.xlu0 %v882, 123
    %v1139 = vpop.permute.xlu0 %1138
    %1140 = vrot.lane.b32.xlu0 %v865, 123
    %v1141 = vpop.permute.xlu0 %1140
    %1142 = vrot.lane.b32.xlu0 %v883, 123
    %v1143 = vpop.permute.xlu0 %1142
    %1144 = vrot.lane.b32.xlu0 %v884, 123
    %v1145 = vpop.permute.xlu0 %1144
    %1146 = vrot.lane.b32.xlu0 %v885, 123
    %v1147 = vpop.permute.xlu0 %1146
    %1148 = vrot.lane.b32.xlu0 %v886, 123
    %v1149 = vpop.permute.xlu0 %1148
    %1150 = vrot.lane.b32.xlu0 %v887, 123
    %v1151 = vpop.permute.xlu0 %1150
    %1152 = vrot.lane.b32.xlu0 %v877, 123
    %v1153 = vpop.permute.xlu0 %1152
    %1154 = vrot.lane.b32.xlu0 %v912, 123
    %v1155 = vpop.permute.xlu0 %1154
    %1156 = vrot.lane.b32.xlu0 %v913, 123
    %v1157 = vpop.permute.xlu0 %1156
    %1158 = vrot.lane.b32.xlu0 %v914, 123
    %v1159 = vpop.permute.xlu0 %1158
    %1160 = vrot.lane.b32.xlu0 %v915, 123
    %v1161 = vpop.permute.xlu0 %1160
    %1162 = vrot.lane.b32.xlu0 %v916, 123
    %v1163 = vpop.permute.xlu0 %1162
    %1164 = vrot.lane.b32.xlu0 %v899, 123
    %v1165 = vpop.permute.xlu0 %1164
    %1166 = vrot.lane.b32.xlu0 %v917, 123
    %v1167 = vpop.permute.xlu0 %1166
    %1168 = vrot.lane.b32.xlu0 %v918, 123
    %v1169 = vpop.permute.xlu0 %1168
    %1170 = vrot.lane.b32.xlu0 %v919, 123
    %v1171 = vpop.permute.xlu0 %1170
    %1172 = vrot.lane.b32.xlu0 %v920, 123
    %v1173 = vpop.permute.xlu0 %1172
    %1174 = vrot.lane.b32.xlu0 %v921, 123
    %v1175 = vpop.permute.xlu0 %1174
    %1176 = vrot.lane.b32.xlu0 %v911, 123
    %v1177 = vpop.permute.xlu0 %1176
    %v1178 = vsel %vm403, %v963, %v965
    %v1179 = vsel %vm403, %v965, %v967
    %v1180 = vsel %vm403, %v967, %v969
    %v1181 = vsel %vm403, %v969, %v971
    %v1182 = vsel %vm403, %v971, %v973
    %v1183 = vsel %vm403, %v975, %v977
    %v1184 = vsel %vm403, %v977, %v979
    %v1185 = vsel %vm403, %v979, %v981
    %v1186 = vsel %vm403, %v981, %v983
    %v1187 = vsel %vm403, %v983, %v985
    %v1188 = vsel %vm403, %v987, %v989
    %v1189 = vsel %vm403, %v989, %v991
    %v1190 = vsel %vm403, %v991, %v993
    %v1191 = vsel %vm403, %v993, %v995
    %v1192 = vsel %vm403, %v995, %v997
    %v1193 = vsel %vm403, %v999, %v1001
    %v1194 = vsel %vm403, %v1001, %v1003
    %v1195 = vsel %vm403, %v1003, %v1005
    %v1196 = vsel %vm403, %v1005, %v1007
    %v1197 = vsel %vm403, %v1007, %v1009
    %v1198 = vsel %vm403, %v1011, %v1013
    %v1199 = vsel %vm403, %v1013, %v1015
    %v1200 = vsel %vm403, %v1015, %v1017
    %v1201 = vsel %vm403, %v1017, %v1019
    %v1202 = vsel %vm403, %v1019, %v1021
    %v1203 = vsel %vm403, %v1023, %v1025
    %v1204 = vsel %vm403, %v1025, %v1027
    %v1205 = vsel %vm403, %v1027, %v1029
    %v1206 = vsel %vm403, %v1029, %v1031
    %v1207 = vsel %vm403, %v1031, %v1033
    %v1208 = vsel %vm403, %v1035, %v1037
    %v1209 = vsel %vm403, %v1037, %v1039
    %v1210 = vsel %vm403, %v1039, %v1041
    %v1211 = vsel %vm403, %v1041, %v1043
    %v1212 = vsel %vm403, %v1043, %v1045
    %v1213 = vsel %vm403, %v1047, %v1049
    %v1214 = vsel %vm403, %v1049, %v1051
    %v1215 = vsel %vm403, %v1051, %v1053
    %v1216 = vsel %vm403, %v1053, %v1055
    %v1217 = vsel %vm403, %v1055, %v1057
    %v1218 = vsel %vm403, %v1059, %v1061
    %v1219 = vsel %vm403, %v1061, %v1063
    %v1220 = vsel %vm403, %v1063, %v1065
    %v1221 = vsel %vm403, %v1065, %v1067
    %v1222 = vsel %vm403, %v1067, %v1069
    %v1223 = vsel %vm403, %v1071, %v1073
    %v1224 = vsel %vm403, %v1073, %v1075
    %v1225 = vsel %vm403, %v1075, %v1077
    %v1226 = vsel %vm403, %v1077, %v1079
    %v1227 = vsel %vm403, %v1079, %v1081
    %v1228 = vsel %vm403, %v1083, %v1085
    %v1229 = vsel %vm403, %v1085, %v1087
    %v1230 = vsel %vm403, %v1087, %v1089
    %v1231 = vsel %vm403, %v1089, %v1091
    %v1232 = vsel %vm403, %v1091, %v1093
    %v1233 = vsel %vm403, %v1095, %v1097
    %v1234 = vsel %vm403, %v1097, %v1099
    %v1235 = vsel %vm403, %v1099, %v1101
    %v1236 = vsel %vm403, %v1101, %v1103
    %v1237 = vsel %vm403, %v1103, %v1105
    %v1238 = vsel %vm403, %v1107, %v1109
    %v1239 = vsel %vm403, %v1109, %v1111
    %v1240 = vsel %vm403, %v1111, %v1113
    %v1241 = vsel %vm403, %v1113, %v1115
    %v1242 = vsel %vm403, %v1115, %v1117
    %v1243 = vsel %vm403, %v1119, %v1121
    %v1244 = vsel %vm403, %v1121, %v1123
    %v1245 = vsel %vm403, %v1123, %v1125
    %v1246 = vsel %vm403, %v1125, %v1127
    %v1247 = vsel %vm403, %v1127, %v1129
    %v1248 = vsel %vm403, %v1131, %v1133
    %v1249 = vsel %vm403, %v1133, %v1135
    %v1250 = vsel %vm403, %v1135, %v1137
    %v1251 = vsel %vm403, %v1137, %v1139
    %v1252 = vsel %vm403, %v1139, %v1141
    %v1253 = vsel %vm403, %v1143, %v1145
    %v1254 = vsel %vm403, %v1145, %v1147
    %v1255 = vsel %vm403, %v1147, %v1149
    %v1256 = vsel %vm403, %v1149, %v1151
    %v1257 = vsel %vm403, %v1151, %v1153
    %v1258 = vsel %vm403, %v1155, %v1157
    %v1259 = vsel %vm403, %v1157, %v1159
    %v1260 = vsel %vm403, %v1159, %v1161
    %v1261 = vsel %vm403, %v1161, %v1163
    %v1262 = vsel %vm403, %v1163, %v1165
    %v1263 = vsel %vm403, %v1167, %v1169
    %v1264 = vsel %vm403, %v1169, %v1171
    %v1265 = vsel %vm403, %v1171, %v1173
    %v1266 = vsel %vm403, %v1173, %v1175
    %v1267 = vsel %vm403, %v1175, %v1177
    %vm1376 = vcmask 130048
    %v1377 = vsel %vm1376, %v33, 0
    %v1379 = vsel %vm1376, %v35, 0
    %v1381 = vsel %vm1376, %v37, 0
    %v1383 = vsel %vm1376, %v39, 0
    %v1385 = vsel %vm1376, %v41, 0
    %v1387 = vsel %vm1376, %v43, 0
    %v1389 = vsel %vm1376, %v45, 0
    %v1391 = vsel %vm1376, %v47, 0
    %1393 = vmatpush.msra.mxu0 %v1253
    %1394 = vmatpush.msra.mxu0 %v1248
    %1395 = vmatpush.msra.mxu0 %v1243
    %1396 = vmatpush.msra.mxu0 %v1238
    %1397 = vmatpush.msra.mxu0 %v1233
    %1398 = vmatpush.msra.mxu0 %v1228
    %1399 = vmatpush.msra.mxu0 %v1223
    %1400 = vmatpush.msra.mxu0 %v1218
    %1401 = vmatpush.msra.mxu0 %v1213
    %1402 = vmatpush.msra.mxu0 %v1208
    %1403 = vmatpush.msra.mxu0 %v1203
    %1404 = vmatpush.msra.mxu0 %v1198
    %1405 = vmatpush.msra.mxu0 %v1193
    %1406 = vmatpush.msra.mxu0 %v1188
    %1407 = vmatpush.msra.mxu0 %v1183
    %1408 = vmatpush.msra.mxu0 %v1178
    %1409 = vmatmul.f32.gmra.mxu0 %v32
    %v1410 = vpop.f32.mrf.mxu0
    %v1411 = vadd.f32 %v925, %v1410
    %1412 = vmatmul.f32.gmra.mxu0 %v34
    %v1413 = vpop.f32.mrf.mxu0
    %v1414 = vadd.f32 %v930, %v1413
    %1415 = vmatmul.f32.gmra.mxu0 %v36
    %v1416 = vpop.f32.mrf.mxu0
    %v1417 = vadd.f32 %v935, %v1416
    %1418 = vmatmul.f32.gmra.mxu0 %v38
    %v1419 = vpop.f32.mrf.mxu0
    %v1420 = vadd.f32 %v940, %v1419
    %1421 = vmatmul.f32.gmra.mxu0 %v40
    %v1422 = vpop.f32.mrf.mxu0
    %v1423 = vadd.f32 %v945, %v1422
    %1424 = vmatmul.f32.gmra.mxu0 %v42
    %v1425 = vpop.f32.mrf.mxu0
    %v1426 = vadd.f32 %v950, %v1425
    %1427 = vmatmul.f32.gmra.mxu0 %v44
    %v1428 = vpop.f32.mrf.mxu0
    %v1429 = vadd.f32 %v955, %v1428
    %1430 = vmatmul.f32.gmra.mxu0 %v46
    %v1431 = vpop.f32.mrf.mxu0
    %v1432 = vadd.f32 %v960, %v1431
    %1433 = vdwg.mxu0
    %1434 = vmatpush.msra.mxu0 0.0
    %1435 = vmatpush.msra.mxu0 0.0
    %1436 = vmatpush.msra.mxu0 0.0
    %1437 = vmatpush.msra.mxu0 0.0
    %1438 = vmatpush.msra.mxu0 0.0
    %1439 = vmatpush.msra.mxu0 0.0
    %1440 = vmatpush.msra.mxu0 0.0
    %1441 = vmatpush.msra.mxu0 0.0
    %1442 = vmatpush.msra.mxu0 0.0
    %1443 = vmatpush.msra.mxu0 0.0
    %1444 = vmatpush.msra.mxu0 0.0
    %1445 = vmatpush.msra.mxu0 0.0
    %1446 = vmatpush.msra.mxu0 0.0
    %1447 = vmatpush.msra.mxu0 0.0
    %1448 = vmatpush.msra.mxu0 %v1263
    %1449 = vmatpush.msra.mxu0 %v1258
    %1450 = vmatmul.f32.gmra.mxu0 %v1377
    %v1451 = vpop.f32.mrf.mxu0
    %v1452 = vadd.f32 %v1411, %v1451
    %1453 = vmatmul.f32.gmra.mxu0 %v1379
    %v1454 = vpop.f32.mrf.mxu0
    %v1455 = vadd.f32 %v1414, %v1454
    %1456 = vmatmul.f32.gmra.mxu0 %v1381
    %v1457 = vpop.f32.mrf.mxu0
    %v1458 = vadd.f32 %v1417, %v1457
    %1459 = vmatmul.f32.gmra.mxu0 %v1383
    %v1460 = vpop.f32.mrf.mxu0
    %v1461 = vadd.f32 %v1420, %v1460
    %1462 = vmatmul.f32.gmra.mxu0 %v1385
    %v1463 = vpop.f32.mrf.mxu0
    %v1464 = vadd.f32 %v1423, %v1463
    %1465 = vmatmul.f32.gmra.mxu0 %v1387
    %v1466 = vpop.f32.mrf.mxu0
    %v1467 = vadd.f32 %v1426, %v1466
    %1468 = vmatmul.f32.gmra.mxu0 %v1389
    %v1469 = vpop.f32.mrf.mxu0
    %v1470 = vadd.f32 %v1429, %v1469
    %1471 = vmatmul.f32.gmra.mxu0 %v1391
    %v1472 = vpop.f32.mrf.mxu0
    %v1473 = vadd.f32 %v1432, %v1472
    %1474 = vdwg.mxu0
    %1475 = vmatpush.msra.mxu0 %v1254
    %1476 = vmatpush.msra.mxu0 %v1249
    %1477 = vmatpush.msra.mxu0 %v1244
    %1478 = vmatpush.msra.mxu0 %v1239
    %1479 = vmatpush.msra.mxu0 %v1234
    %1480 = vmatpush.msra.mxu0 %v1229
    %1481 = vmatpush.msra.mxu0 %v1224
    %1482 = vmatpush.msra.mxu0 %v1219
    %1483 = vmatpush.msra.mxu0 %v1214
    %1484 = vmatpush.msra.mxu0 %v1209
    %1485 = vmatpush.msra.mxu0 %v1204
    %1486 = vmatpush.msra.mxu0 %v1199
    %1487 = vmatpush.msra.mxu0 %v1194
    %1488 = vmatpush.msra.mxu0 %v1189
    %1489 = vmatpush.msra.mxu0 %v1184
    %1490 = vmatpush.msra.mxu0 %v1179
    %1491 = vmatmul.f32.gmra.mxu0 %v32
    %v1492 = vpop.f32.mrf.mxu0
    %v1493 = vadd.f32 %v925, %v1492
    %1494 = vmatmul.f32.gmra.mxu0 %v34
    %v1495 = vpop.f32.mrf.mxu0
    %v1496 = vadd.f32 %v930, %v1495
    %1497 = vmatmul.f32.gmra.mxu0 %v36
    %v1498 = vpop.f32.mrf.mxu0
    %v1499 = vadd.f32 %v935, %v1498
    %1500 = vmatmul.f32.gmra.mxu0 %v38
    %v1501 = vpop.f32.mrf.mxu0
    %v1502 = vadd.f32 %v940, %v1501
    %1503 = vmatmul.f32.gmra.mxu0 %v40
    %v1504 = vpop.f32.mrf.mxu0
    %v1505 = vadd.f32 %v945, %v1504
    %1506 = vmatmul.f32.gmra.mxu0 %v42
    %v1507 = vpop.f32.mrf.mxu0
    %v1508 = vadd.f32 %v950, %v1507
    %1509 = vmatmul.f32.gmra.mxu0 %v44
    %v1510 = vpop.f32.mrf.mxu0
    %v1511 = vadd.f32 %v955, %v1510
    %1512 = vmatmul.f32.gmra.mxu0 %v46
    %v1513 = vpop.f32.mrf.mxu0
    %v1514 = vadd.f32 %v960, %v1513
    %1515 = vdwg.mxu0
    %1516 = vmatpush.msra.mxu0 0.0
    %1517 = vmatpush.msra.mxu0 0.0
    %1518 = vmatpush.msra.mxu0 0.0
    %1519 = vmatpush.msra.mxu0 0.0
    %1520 = vmatpush.msra.mxu0 0.0
    %1521 = vmatpush.msra.mxu0 0.0
    %1522 = vmatpush.msra.mxu0 0.0
    %1523 = vmatpush.msra.mxu0 0.0
    %1524 = vmatpush.msra.mxu0 0.0
    %1525 = vmatpush.msra.mxu0 0.0
    %1526 = vmatpush.msra.mxu0 0.0
    %1527 = vmatpush.msra.mxu0 0.0
    %1528 = vmatpush.msra.mxu0 0.0
    %1529 = vmatpush.msra.mxu0 0.0
    %1530 = vmatpush.msra.mxu0 %v1264
    %1531 = vmatpush.msra.mxu0 %v1259
    %1532 = vmatmul.f32.gmra.mxu0 %v1377
    %v1533 = vpop.f32.mrf.mxu0
    %v1534 = vadd.f32 %v1493, %v1533
    %1535 = vmatmul.f32.gmra.mxu0 %v1379
    %v1536 = vpop.f32.mrf.mxu0
    %v1537 = vadd.f32 %v1496, %v1536
    %1538 = vmatmul.f32.gmra.mxu0 %v1381
    %v1539 = vpop.f32.mrf.mxu0
    %v1540 = vadd.f32 %v1499, %v1539
    %1541 = vmatmul.f32.gmra.mxu0 %v1383
    %v1542 = vpop.f32.mrf.mxu0
    %v1543 = vadd.f32 %v1502, %v1542
    %1544 = vmatmul.f32.gmra.mxu0 %v1385
    %v1545 = vpop.f32.mrf.mxu0
    %v1546 = vadd.f32 %v1505, %v1545
    %1547 = vmatmul.f32.gmra.mxu0 %v1387
    %v1548 = vpop.f32.mrf.mxu0
    %v1549 = vadd.f32 %v1508, %v1548
    %1550 = vmatmul.f32.gmra.mxu0 %v1389
    %v1551 = vpop.f32.mrf.mxu0
    %v1552 = vadd.f32 %v1511, %v1551
    %1553 = vmatmul.f32.gmra.mxu0 %v1391
    %v1554 = vpop.f32.mrf.mxu0
    %v1555 = vadd.f32 %v1514, %v1554
    %1556 = vdwg.mxu0
    %1557 = vmatpush.msra.mxu0 %v1255
    %1558 = vmatpush.msra.mxu0 %v1250
    %1559 = vmatpush.msra.mxu0 %v1245
    %1560 = vmatpush.msra.mxu0 %v1240
    %1561 = vmatpush.msra.mxu0 %v1235
    %1562 = vmatpush.msra.mxu0 %v1230
    %1563 = vmatpush.msra.mxu0 %v1225
    %1564 = vmatpush.msra.mxu0 %v1220
    %1565 = vmatpush.msra.mxu0 %v1215
    %1566 = vmatpush.msra.mxu0 %v1210
    %1567 = vmatpush.msra.mxu0 %v1205
    %1568 = vmatpush.msra.mxu0 %v1200
    %1569 = vmatpush.msra.mxu0 %v1195
    %1570 = vmatpush.msra.mxu0 %v1190
    %1571 = vmatpush.msra.mxu0 %v1185
    %1572 = vmatpush.msra.mxu0 %v1180
    %1573 = vmatmul.f32.gmra.mxu0 %v32
    %v1574 = vpop.f32.mrf.mxu0
    %v1575 = vadd.f32 %v925, %v1574
    %1576 = vmatmul.f32.gmra.mxu0 %v34
    %v1577 = vpop.f32.mrf.mxu0
    %v1578 = vadd.f32 %v930, %v1577
    %1579 = vmatmul.f32.gmra.mxu0 %v36
    %v1580 = vpop.f32.mrf.mxu0
    %v1581 = vadd.f32 %v935, %v1580
    %1582 = vmatmul.f32.gmra.mxu0 %v38
    %v1583 = vpop.f32.mrf.mxu0
    %v1584 = vadd.f32 %v940, %v1583
    %1585 = vmatmul.f32.gmra.mxu0 %v40
    %v1586 = vpop.f32.mrf.mxu0
    %v1587 = vadd.f32 %v945, %v1586
    %1588 = vmatmul.f32.gmra.mxu0 %v42
    %v1589 = vpop.f32.mrf.mxu0
    %v1590 = vadd.f32 %v950, %v1589
    %1591 = vmatmul.f32.gmra.mxu0 %v44
    %v1592 = vpop.f32.mrf.mxu0
    %v1593 = vadd.f32 %v955, %v1592
    %1594 = vmatmul.f32.gmra.mxu0 %v46
    %v1595 = vpop.f32.mrf.mxu0
    %v1596 = vadd.f32 %v960, %v1595
    %1597 = vdwg.mxu0
    %1598 = vmatpush.msra.mxu0 0.0
    %1599 = vmatpush.msra.mxu0 0.0
    %1600 = vmatpush.msra.mxu0 0.0
    %1601 = vmatpush.msra.mxu0 0.0
    %1602 = vmatpush.msra.mxu0 0.0
    %1603 = vmatpush.msra.mxu0 0.0
    %1604 = vmatpush.msra.mxu0 0.0
    %1605 = vmatpush.msra.mxu0 0.0
    %1606 = vmatpush.msra.mxu0 0.0
    %1607 = vmatpush.msra.mxu0 0.0
    %1608 = vmatpush.msra.mxu0 0.0
    %1609 = vmatpush.msra.mxu0 0.0
    %1610 = vmatpush.msra.mxu0 0.0
    %1611 = vmatpush.msra.mxu0 0.0
    %1612 = vmatpush.msra.mxu0 %v1265
    %1613 = vmatpush.msra.mxu0 %v1260
    %1614 = vmatmul.f32.gmra.mxu0 %v1377
    %v1615 = vpop.f32.mrf.mxu0
    %v1616 = vadd.f32 %v1575, %v1615
    %1617 = vmatmul.f32.gmra.mxu0 %v1379
    %v1618 = vpop.f32.mrf.mxu0
    %v1619 = vadd.f32 %v1578, %v1618
    %1620 = vmatmul.f32.gmra.mxu0 %v1381
    %v1621 = vpop.f32.mrf.mxu0
    %v1622 = vadd.f32 %v1581, %v1621
    %1623 = vmatmul.f32.gmra.mxu0 %v1383
    %v1624 = vpop.f32.mrf.mxu0
    %v1625 = vadd.f32 %v1584, %v1624
    %1626 = vmatmul.f32.gmra.mxu0 %v1385
    %v1627 = vpop.f32.mrf.mxu0
    %v1628 = vadd.f32 %v1587, %v1627
    %1629 = vmatmul.f32.gmra.mxu0 %v1387
    %v1630 = vpop.f32.mrf.mxu0
    %v1631 = vadd.f32 %v1590, %v1630
    %1632 = vmatmul.f32.gmra.mxu0 %v1389
    %v1633 = vpop.f32.mrf.mxu0
    %v1634 = vadd.f32 %v1593, %v1633
    %1635 = vmatmul.f32.gmra.mxu0 %v1391
    %v1636 = vpop.f32.mrf.mxu0
    %v1637 = vadd.f32 %v1596, %v1636
    %1638 = vdwg.mxu0
    %1639 = vmatpush.msra.mxu0 %v1256
    %1640 = vmatpush.msra.mxu0 %v1251
    %1641 = vmatpush.msra.mxu0 %v1246
    %1642 = vmatpush.msra.mxu0 %v1241
    %1643 = vmatpush.msra.mxu0 %v1236
    %1644 = vmatpush.msra.mxu0 %v1231
    %1645 = vmatpush.msra.mxu0 %v1226
    %1646 = vmatpush.msra.mxu0 %v1221
    %1647 = vmatpush.msra.mxu0 %v1216
    %1648 = vmatpush.msra.mxu0 %v1211
    %1649 = vmatpush.msra.mxu0 %v1206
    %1650 = vmatpush.msra.mxu0 %v1201
    %1651 = vmatpush.msra.mxu0 %v1196
    %1652 = vmatpush.msra.mxu0 %v1191
    %1653 = vmatpush.msra.mxu0 %v1186
    %1654 = vmatpush.msra.mxu0 %v1181
    %1655 = vmatmul.f32.gmra.mxu0 %v32
    %v1656 = vpop.f32.mrf.mxu0
    %v1657 = vadd.f32 %v925, %v1656
    %1658 = vmatmul.f32.gmra.mxu0 %v34
    %v1659 = vpop.f32.mrf.mxu0
    %v1660 = vadd.f32 %v930, %v1659
    %1661 = vmatmul.f32.gmra.mxu0 %v36
    %v1662 = vpop.f32.mrf.mxu0
    %v1663 = vadd.f32 %v935, %v1662
    %1664 = vmatmul.f32.gmra.mxu0 %v38
    %v1665 = vpop.f32.mrf.mxu0
    %v1666 = vadd.f32 %v940, %v1665
    %1667 = vmatmul.f32.gmra.mxu0 %v40
    %v1668 = vpop.f32.mrf.mxu0
    %v1669 = vadd.f32 %v945, %v1668
    %1670 = vmatmul.f32.gmra.mxu0 %v42
    %v1671 = vpop.f32.mrf.mxu0
    %v1672 = vadd.f32 %v950, %v1671
    %1673 = vmatmul.f32.gmra.mxu0 %v44
    %v1674 = vpop.f32.mrf.mxu0
    %v1675 = vadd.f32 %v955, %v1674
    %1676 = vmatmul.f32.gmra.mxu0 %v46
    %v1677 = vpop.f32.mrf.mxu0
    %v1678 = vadd.f32 %v960, %v1677
    %1679 = vdwg.mxu0
    %1680 = vmatpush.msra.mxu0 0.0
    %1681 = vmatpush.msra.mxu0 0.0
    %1682 = vmatpush.msra.mxu0 0.0
    %1683 = vmatpush.msra.mxu0 0.0
    %1684 = vmatpush.msra.mxu0 0.0
    %1685 = vmatpush.msra.mxu0 0.0
    %1686 = vmatpush.msra.mxu0 0.0
    %1687 = vmatpush.msra.mxu0 0.0
    %1688 = vmatpush.msra.mxu0 0.0
    %1689 = vmatpush.msra.mxu0 0.0
    %1690 = vmatpush.msra.mxu0 0.0
    %1691 = vmatpush.msra.mxu0 0.0
    %1692 = vmatpush.msra.mxu0 0.0
    %1693 = vmatpush.msra.mxu0 0.0
    %1694 = vmatpush.msra.mxu0 %v1266
    %1695 = vmatpush.msra.mxu0 %v1261
    %1696 = vmatmul.f32.gmra.mxu0 %v1377
    %v1697 = vpop.f32.mrf.mxu0
    %v1698 = vadd.f32 %v1657, %v1697
    %1699 = vmatmul.f32.gmra.mxu0 %v1379
    %v1700 = vpop.f32.mrf.mxu0
    %v1701 = vadd.f32 %v1660, %v1700
    %1702 = vmatmul.f32.gmra.mxu0 %v1381
    %v1703 = vpop.f32.mrf.mxu0
    %v1704 = vadd.f32 %v1663, %v1703
    %1705 = vmatmul.f32.gmra.mxu0 %v1383
    %v1706 = vpop.f32.mrf.mxu0
    %v1707 = vadd.f32 %v1666, %v1706
    %1708 = vmatmul.f32.gmra.mxu0 %v1385
    %v1709 = vpop.f32.mrf.mxu0
    %v1710 = vadd.f32 %v1669, %v1709
    %1711 = vmatmul.f32.gmra.mxu0 %v1387
    %v1712 = vpop.f32.mrf.mxu0
    %v1713 = vadd.f32 %v1672, %v1712
    %1714 = vmatmul.f32.gmra.mxu0 %v1389
    %v1715 = vpop.f32.mrf.mxu0
    %v1716 = vadd.f32 %v1675, %v1715
    %1717 = vmatmul.f32.gmra.mxu0 %v1391
    %v1718 = vpop.f32.mrf.mxu0
    %v1719 = vadd.f32 %v1678, %v1718
    %1720 = vdwg.mxu0
    %1721 = vmatpush.msra.mxu0 %v1257
    %1722 = vmatpush.msra.mxu0 %v1252
    %1723 = vmatpush.msra.mxu0 %v1247
    %1724 = vmatpush.msra.mxu0 %v1242
    %1725 = vmatpush.msra.mxu0 %v1237
    %1726 = vmatpush.msra.mxu0 %v1232
    %1727 = vmatpush.msra.mxu0 %v1227
    %1728 = vmatpush.msra.mxu0 %v1222
    %1729 = vmatpush.msra.mxu0 %v1217
    %1730 = vmatpush.msra.mxu0 %v1212
    %1731 = vmatpush.msra.mxu0 %v1207
    %1732 = vmatpush.msra.mxu0 %v1202
    %1733 = vmatpush.msra.mxu0 %v1197
    %1734 = vmatpush.msra.mxu0 %v1192
    %1735 = vmatpush.msra.mxu0 %v1187
    %1736 = vmatpush.msra.mxu0 %v1182
    %1737 = vmatmul.f32.gmra.mxu0 %v32
    %v1738 = vpop.f32.mrf.mxu0
    %v1739 = vadd.f32 %v925, %v1738
    %1740 = vmatmul.f32.gmra.mxu0 %v34
    %v1741 = vpop.f32.mrf.mxu0
    %v1742 = vadd.f32 %v930, %v1741
    %1743 = vmatmul.f32.gmra.mxu0 %v36
    %v1744 = vpop.f32.mrf.mxu0
    %v1745 = vadd.f32 %v935, %v1744
    %1746 = vmatmul.f32.gmra.mxu0 %v38
    %v1747 = vpop.f32.mrf.mxu0
    %v1748 = vadd.f32 %v940, %v1747
    %1749 = vmatmul.f32.gmra.mxu0 %v40
    %v1750 = vpop.f32.mrf.mxu0
    %v1751 = vadd.f32 %v945, %v1750
    %1752 = vmatmul.f32.gmra.mxu0 %v42
    %v1753 = vpop.f32.mrf.mxu0
    %v1754 = vadd.f32 %v950, %v1753
    %1755 = vmatmul.f32.gmra.mxu0 %v44
    %v1756 = vpop.f32.mrf.mxu0
    %v1757 = vadd.f32 %v955, %v1756
    %1758 = vmatmul.f32.gmra.mxu0 %v46
    %v1759 = vpop.f32.mrf.mxu0
    %v1760 = vadd.f32 %v960, %v1759
    %1761 = vdwg.mxu0
    %1762 = vmatpush.msra.mxu0 0.0
    %1763 = vmatpush.msra.mxu0 0.0
    %1764 = vmatpush.msra.mxu0 0.0
    %1765 = vmatpush.msra.mxu0 0.0
    %1766 = vmatpush.msra.mxu0 0.0
    %1767 = vmatpush.msra.mxu0 0.0
    %1768 = vmatpush.msra.mxu0 0.0
    %1769 = vmatpush.msra.mxu0 0.0
    %1770 = vmatpush.msra.mxu0 0.0
    %1771 = vmatpush.msra.mxu0 0.0
    %1772 = vmatpush.msra.mxu0 0.0
    %1773 = vmatpush.msra.mxu0 0.0
    %1774 = vmatpush.msra.mxu0 0.0
    %1775 = vmatpush.msra.mxu0 0.0
    %1776 = vmatpush.msra.mxu0 %v1267
    %1777 = vmatpush.msra.mxu0 %v1262
    %1778 = vmatmul.f32.gmra.mxu0 %v1377
    %v1779 = vpop.f32.mrf.mxu0
    %v1780 = vadd.f32 %v1739, %v1779
    %1781 = vmatmul.f32.gmra.mxu0 %v1379
    %v1782 = vpop.f32.mrf.mxu0
    %v1783 = vadd.f32 %v1742, %v1782
    %1784 = vmatmul.f32.gmra.mxu0 %v1381
    %v1785 = vpop.f32.mrf.mxu0
    %v1786 = vadd.f32 %v1745, %v1785
    %1787 = vmatmul.f32.gmra.mxu0 %v1383
    %v1788 = vpop.f32.mrf.mxu0
    %v1789 = vadd.f32 %v1748, %v1788
    %1790 = vmatmul.f32.gmra.mxu0 %v1385
    %v1791 = vpop.f32.mrf.mxu0
    %v1792 = vadd.f32 %v1751, %v1791
    %1793 = vmatmul.f32.gmra.mxu0 %v1387
    %v1794 = vpop.f32.mrf.mxu0
    %v1795 = vadd.f32 %v1754, %v1794
    %1796 = vmatmul.f32.gmra.mxu0 %v1389
    %v1797 = vpop.f32.mrf.mxu0
    %v1798 = vadd.f32 %v1757, %v1797
    %1799 = vmatmul.f32.gmra.mxu0 %v1391
    %v1800 = vpop.f32.mrf.mxu0
    %v1801 = vadd.f32 %v1760, %v1800
    %1802 = vdwg.mxu0
    %1803 = vmatpush.msra.mxu0 %v1153
    %1804 = vmatpush.msra.mxu0 %v1141
    %1805 = vmatpush.msra.mxu0 %v1129
    %1806 = vmatpush.msra.mxu0 %v1117
    %1807 = vmatpush.msra.mxu0 %v1105
    %1808 = vmatpush.msra.mxu0 %v1093
    %1809 = vmatpush.msra.mxu0 %v1081
    %1810 = vmatpush.msra.mxu0 %v1069
    %1811 = vmatpush.msra.mxu0 %v1057
    %1812 = vmatpush.msra.mxu0 %v1045
    %1813 = vmatpush.msra.mxu0 %v1033
    %1814 = vmatpush.msra.mxu0 %v1021
    %1815 = vmatpush.msra.mxu0 %v1009
    %1816 = vmatpush.msra.mxu0 %v997
    %1817 = vmatpush.msra.mxu0 %v985
    %1818 = vmatpush.msra.mxu0 %v973
    %1819 = vmatmul.f32.gmra.mxu0 %v32
    %v1820 = vpop.f32.mrf.mxu0
    %v1821 = vadd.f32 %v925, %v1820
    %1822 = vmatmul.f32.gmra.mxu0 %v34
    %v1823 = vpop.f32.mrf.mxu0
    %v1824 = vadd.f32 %v930, %v1823
    %1825 = vmatmul.f32.gmra.mxu0 %v36
    %v1826 = vpop.f32.mrf.mxu0
    %v1827 = vadd.f32 %v935, %v1826
    %1828 = vmatmul.f32.gmra.mxu0 %v38
    %v1829 = vpop.f32.mrf.mxu0
    %v1830 = vadd.f32 %v940, %v1829
    %1831 = vmatmul.f32.gmra.mxu0 %v40
    %v1832 = vpop.f32.mrf.mxu0
    %v1833 = vadd.f32 %v945, %v1832
    %1834 = vmatmul.f32.gmra.mxu0 %v42
    %v1835 = vpop.f32.mrf.mxu0
    %v1836 = vadd.f32 %v950, %v1835
    %1837 = vmatmul.f32.gmra.mxu0 %v44
    %v1838 = vpop.f32.mrf.mxu0
    %v1839 = vadd.f32 %v955, %v1838
    %1840 = vmatmul.f32.gmra.mxu0 %v46
    %v1841 = vpop.f32.mrf.mxu0
    %v1842 = vadd.f32 %v960, %v1841
    %1843 = vdwg.mxu0
    %1844 = vmatpush.msra.mxu0 0.0
    %1845 = vmatpush.msra.mxu0 0.0
    %1846 = vmatpush.msra.mxu0 0.0
    %1847 = vmatpush.msra.mxu0 0.0
    %1848 = vmatpush.msra.mxu0 0.0
    %1849 = vmatpush.msra.mxu0 0.0
    %1850 = vmatpush.msra.mxu0 0.0
    %1851 = vmatpush.msra.mxu0 0.0
    %1852 = vmatpush.msra.mxu0 0.0
    %1853 = vmatpush.msra.mxu0 0.0
    %1854 = vmatpush.msra.mxu0 0.0
    %1855 = vmatpush.msra.mxu0 0.0
    %1856 = vmatpush.msra.mxu0 0.0
    %1857 = vmatpush.msra.mxu0 0.0
    %1858 = vmatpush.msra.mxu0 %v1177
    %1859 = vmatpush.msra.mxu0 %v1165
    %1860 = vmatmul.f32.gmra.mxu0 %v1377
    %v1861 = vpop.f32.mrf.mxu0
    %v1862 = vadd.f32 %v1821, %v1861
    %1863 = vmatmul.f32.gmra.mxu0 %v1379
    %v1864 = vpop.f32.mrf.mxu0
    %v1865 = vadd.f32 %v1824, %v1864
    %1866 = vmatmul.f32.gmra.mxu0 %v1381
    %v1867 = vpop.f32.mrf.mxu0
    %v1868 = vadd.f32 %v1827, %v1867
    %1869 = vmatmul.f32.gmra.mxu0 %v1383
    %v1870 = vpop.f32.mrf.mxu0
    %v1871 = vadd.f32 %v1830, %v1870
    %1872 = vmatmul.f32.gmra.mxu0 %v1385
    %v1873 = vpop.f32.mrf.mxu0
    %v1874 = vadd.f32 %v1833, %v1873
    %1875 = vmatmul.f32.gmra.mxu0 %v1387
    %v1876 = vpop.f32.mrf.mxu0
    %v1877 = vadd.f32 %v1836, %v1876
    %1878 = vmatmul.f32.gmra.mxu0 %v1389
    %v1879 = vpop.f32.mrf.mxu0
    %v1880 = vadd.f32 %v1839, %v1879
    %1881 = vmatmul.f32.gmra.mxu0 %v1391
    %v1882 = vpop.f32.mrf.mxu0
    %v1883 = vadd.f32 %v1842, %v1882
    %1884 = vdwg.mxu0
    %vm1885 = vcmp.gt.f32.partialorder %v1452, 0.0
    %vm1886 = vcmp.gt.f32.partialorder %v1534, 0.0
    %vm1887 = vcmp.gt.f32.partialorder %v1616, 0.0
    %vm1888 = vcmp.gt.f32.partialorder %v1698, 0.0
    %vm1889 = vcmp.gt.f32.partialorder %v1780, 0.0
    %vm1890 = vcmp.gt.f32.partialorder %v1862, 0.0
    %vm1891 = vcmp.gt.f32.partialorder %v1455, 0.0
    %vm1892 = vcmp.gt.f32.partialorder %v1537, 0.0
    %vm1893 = vcmp.gt.f32.partialorder %v1619, 0.0
    %vm1894 = vcmp.gt.f32.partialorder %v1701, 0.0
    %vm1895 = vcmp.gt.f32.partialorder %v1783, 0.0
    %vm1896 = vcmp.gt.f32.partialorder %v1865, 0.0
    %vm1897 = vcmp.gt.f32.partialorder %v1458, 0.0
    %vm1898 = vcmp.gt.f32.partialorder %v1540, 0.0
    %vm1899 = vcmp.gt.f32.partialorder %v1622, 0.0
    %vm1900 = vcmp.gt.f32.partialorder %v1704, 0.0
    %vm1901 = vcmp.gt.f32.partialorder %v1786, 0.0
    %vm1902 = vcmp.gt.f32.partialorder %v1868, 0.0
    %vm1903 = vcmp.gt.f32.partialorder %v1461, 0.0
    %vm1904 = vcmp.gt.f32.partialorder %v1543, 0.0
    %vm1905 = vcmp.gt.f32.partialorder %v1625, 0.0
    %vm1906 = vcmp.gt.f32.partialorder %v1707, 0.0
    %vm1907 = vcmp.gt.f32.partialorder %v1789, 0.0
    %vm1908 = vcmp.gt.f32.partialorder %v1871, 0.0
    %vm1909 = vcmp.gt.f32.partialorder %v1464, 0.0
    %vm1910 = vcmp.gt.f32.partialorder %v1546, 0.0
    %vm1911 = vcmp.gt.f32.partialorder %v1628, 0.0
    %vm1912 = vcmp.gt.f32.partialorder %v1710, 0.0
    %vm1913 = vcmp.gt.f32.partialorder %v1792, 0.0
    %vm1914 = vcmp.gt.f32.partialorder %v1874, 0.0
    %vm1915 = vcmp.gt.f32.partialorder %v1467, 0.0
    %vm1916 = vcmp.gt.f32.partialorder %v1549, 0.0
    %vm1917 = vcmp.gt.f32.partialorder %v1631, 0.0
    %vm1918 = vcmp.gt.f32.partialorder %v1713, 0.0
    %vm1919 = vcmp.gt.f32.partialorder %v1795, 0.0
    %vm1920 = vcmp.gt.f32.partialorder %v1877, 0.0
    %vm1921 = vcmp.gt.f32.partialorder %v1470, 0.0
    %vm1922 = vcmp.gt.f32.partialorder %v1552, 0.0
    %vm1923 = vcmp.gt.f32.partialorder %v1634, 0.0
    %vm1924 = vcmp.gt.f32.partialorder %v1716, 0.0
    %vm1925 = vcmp.gt.f32.partialorder %v1798, 0.0
    %vm1926 = vcmp.gt.f32.partialorder %v1880, 0.0
    %vm1927 = vcmp.gt.f32.partialorder %v1473, 0.0
    %vm1928 = vcmp.gt.f32.partialorder %v1555, 0.0
    %vm1929 = vcmp.gt.f32.partialorder %v1637, 0.0
    %vm1930 = vcmp.gt.f32.partialorder %v1719, 0.0
    %vm1931 = vcmp.gt.f32.partialorder %v1801, 0.0
    %vm1932 = vcmp.gt.f32.partialorder %v1883, 0.0
    %v1933 = vmul.f32 %v1452, 0.01
    %v1934 = vmul.f32 %v1534, 0.01
    %v1935 = vmul.f32 %v1616, 0.01
    %v1936 = vmul.f32 %v1698, 0.01
    %v1937 = vmul.f32 %v1780, 0.01
    %v1938 = vmul.f32 %v1862, 0.01
    %v1939 = vmul.f32 %v1455, 0.01
    %v1940 = vmul.f32 %v1537, 0.01
    %v1941 = vmul.f32 %v1619, 0.01
    %v1942 = vmul.f32 %v1701, 0.01
    %v1943 = vmul.f32 %v1783, 0.01
    %v1944 = vmul.f32 %v1865, 0.01
    %v1945 = vmul.f32 %v1458, 0.01
    %v1946 = vmul.f32 %v1540, 0.01
    %v1947 = vmul.f32 %v1622, 0.01
    %v1948 = vmul.f32 %v1704, 0.01
    %v1949 = vmul.f32 %v1786, 0.01
    %v1950 = vmul.f32 %v1868, 0.01
    %v1951 = vmul.f32 %v1461, 0.01
    %v1952 = vmul.f32 %v1543, 0.01
    %v1953 = vmul.f32 %v1625, 0.01
    %v1954 = vmul.f32 %v1707, 0.01
    %v1955 = vmul.f32 %v1789, 0.01
    %v1956 = vmul.f32 %v1871, 0.01
    %v1957 = vmul.f32 %v1464, 0.01
    %v1958 = vmul.f32 %v1546, 0.01
    %v1959 = vmul.f32 %v1628, 0.01
    %v1960 = vmul.f32 %v1710, 0.01
    %v1961 = vmul.f32 %v1792, 0.01
    %v1962 = vmul.f32 %v1874, 0.01
    %v1963 = vmul.f32 %v1467, 0.01
    %v1964 = vmul.f32 %v1549, 0.01
    %v1965 = vmul.f32 %v1631, 0.01
    %v1966 = vmul.f32 %v1713, 0.01
    %v1967 = vmul.f32 %v1795, 0.01
    %v1968 = vmul.f32 %v1877, 0.01
    %v1969 = vmul.f32 %v1470, 0.01
    %v1970 = vmul.f32 %v1552, 0.01
    %v1971 = vmul.f32 %v1634, 0.01
    %v1972 = vmul.f32 %v1716, 0.01
    %v1973 = vmul.f32 %v1798, 0.01
    %v1974 = vmul.f32 %v1880, 0.01
    %v1975 = vmul.f32 %v1473, 0.01
    %v1976 = vmul.f32 %v1555, 0.01
    %v1977 = vmul.f32 %v1637, 0.01
    %v1978 = vmul.f32 %v1719, 0.01
    %v1979 = vmul.f32 %v1801, 0.01
    %v1980 = vmul.f32 %v1883, 0.01
    %v1981 = vsel %vm1885, %v1452, %v1933
    %v1982 = vsel %vm1886, %v1534, %v1934
    %v1983 = vsel %vm1887, %v1616, %v1935
    %v1984 = vsel %vm1888, %v1698, %v1936
    %v1985 = vsel %vm1889, %v1780, %v1937
    %v1986 = vsel %vm1890, %v1862, %v1938
    %v1987 = vsel %vm1891, %v1455, %v1939
    %v1988 = vsel %vm1892, %v1537, %v1940
    %v1989 = vsel %vm1893, %v1619, %v1941
    %v1990 = vsel %vm1894, %v1701, %v1942
    %v1991 = vsel %vm1895, %v1783, %v1943
    %v1992 = vsel %vm1896, %v1865, %v1944
    %v1993 = vsel %vm1897, %v1458, %v1945
    %v1994 = vsel %vm1898, %v1540, %v1946
    %v1995 = vsel %vm1899, %v1622, %v1947
    %v1996 = vsel %vm1900, %v1704, %v1948
    %v1997 = vsel %vm1901, %v1786, %v1949
    %v1998 = vsel %vm1902, %v1868, %v1950
    %v1999 = vsel %vm1903, %v1461, %v1951
    %v2000 = vsel %vm1904, %v1543, %v1952
    %v2001 = vsel %vm1905, %v1625, %v1953
    %v2002 = vsel %vm1906, %v1707, %v1954
    %v2003 = vsel %vm1907, %v1789, %v1955
    %v2004 = vsel %vm1908, %v1871, %v1956
    %v2005 = vsel %vm1909, %v1464, %v1957
    %v2006 = vsel %vm1910, %v1546, %v1958
    %v2007 = vsel %vm1911, %v1628, %v1959
    %v2008 = vsel %vm1912, %v1710, %v1960
    %v2009 = vsel %vm1913, %v1792, %v1961
    %v2010 = vsel %vm1914, %v1874, %v1962
    %v2011 = vsel %vm1915, %v1467, %v1963
    %v2012 = vsel %vm1916, %v1549, %v1964
    %v2013 = vsel %vm1917, %v1631, %v1965
    %v2014 = vsel %vm1918, %v1713, %v1966
    %v2015 = vsel %vm1919, %v1795, %v1967
    %v2016 = vsel %vm1920, %v1877, %v1968
    %v2017 = vsel %vm1921, %v1470, %v1969
    %v2018 = vsel %vm1922, %v1552, %v1970
    %v2019 = vsel %vm1923, %v1634, %v1971
    %v2020 = vsel %vm1924, %v1716, %v1972
    %v2021 = vsel %vm1925, %v1798, %v1973
    %v2022 = vsel %vm1926, %v1880, %v1974
    %v2023 = vsel %vm1927, %v1473, %v1975
    %v2024 = vsel %vm1928, %v1555, %v1976
    %v2025 = vsel %vm1929, %v1637, %v1977
    %v2026 = vsel %vm1930, %v1719, %v1978
    %v2027 = vsel %vm1931, %v1801, %v1979
    %v2028 = vsel %vm1932, %v1883, %v1980
    %2029 = vrot.lane.b32.xlu0 %v614, 104
    %v2030 = vpop.permute.xlu0 %2029
    %2031 = vrot.lane.b32.xlu0 %v615, 104
    %v2032 = vpop.permute.xlu0 %2031
    %2033 = vrot.lane.b32.xlu0 %v616, 104
    %v2034 = vpop.permute.xlu0 %2033
    %2035 = vrot.lane.b32.xlu0 %v617, 104
    %v2036 = vpop.permute.xlu0 %2035
    %2037 = vrot.lane.b32.xlu0 %v618, 104
    %v2038 = vpop.permute.xlu0 %2037
    %2039 = vrot.lane.b32.xlu0 %v619, 104
    %v2040 = vpop.permute.xlu0 %2039
    %vm2041 = vcmask 850944
    %v2042 = vsel %vm2041, %v2030, %v2032
    %v2043 = vsel %vm2041, %v2032, %v2034
    %v2044 = vsel %vm2041, %v2034, %v2036
    %v2045 = vsel %vm2041, %v2036, %v2038
    %v2046 = vsel %vm2041, %v2038, %v2040
    %v2053 = vmul.f32 %v1981, %v2042
    %v2054 = vmul.f32 %v1982, %v2043
    %v2055 = vmul.f32 %v1983, %v2044
    %v2056 = vmul.f32 %v1984, %v2045
    %v2057 = vmul.f32 %v1985, %v2046
    %v2058 = vmul.f32 %v1986, %v2040
    %v2059 = vmul.f32 %v1987, %v2042
    %v2060 = vmul.f32 %v1988, %v2043
    %v2061 = vmul.f32 %v1989, %v2044
    %v2062 = vmul.f32 %v1990, %v2045
    %v2063 = vmul.f32 %v1991, %v2046
    %v2064 = vmul.f32 %v1992, %v2040
    %v2065 = vmul.f32 %v1993, %v2042
    %v2066 = vmul.f32 %v1994, %v2043
    %v2067 = vmul.f32 %v1995, %v2044
    %v2068 = vmul.f32 %v1996, %v2045
    %v2069 = vmul.f32 %v1997, %v2046
    %v2070 = vmul.f32 %v1998, %v2040
    %v2071 = vmul.f32 %v1999, %v2042
    %v2072 = vmul.f32 %v2000, %v2043
    %v2073 = vmul.f32 %v2001, %v2044
    %v2074 = vmul.f32 %v2002, %v2045
    %v2075 = vmul.f32 %v2003, %v2046
    %v2076 = vmul.f32 %v2004, %v2040
    %v2077 = vmul.f32 %v2005, %v2042
    %v2078 = vmul.f32 %v2006, %v2043
    %v2079 = vmul.f32 %v2007, %v2044
    %v2080 = vmul.f32 %v2008, %v2045
    %v2081 = vmul.f32 %v2009, %v2046
    %v2082 = vmul.f32 %v2010, %v2040
    %v2083 = vmul.f32 %v2011, %v2042
    %v2084 = vmul.f32 %v2012, %v2043
    %v2085 = vmul.f32 %v2013, %v2044
    %v2086 = vmul.f32 %v2014, %v2045
    %v2087 = vmul.f32 %v2015, %v2046
    %v2088 = vmul.f32 %v2016, %v2040
    %v2089 = vmul.f32 %v2017, %v2042
    %v2090 = vmul.f32 %v2018, %v2043
    %v2091 = vmul.f32 %v2019, %v2044
    %v2092 = vmul.f32 %v2020, %v2045
    %v2093 = vmul.f32 %v2021, %v2046
    %v2094 = vmul.f32 %v2022, %v2040
    %v2095 = vmul.f32 %v2023, %v2042
    %v2096 = vmul.f32 %v2024, %v2043
    %v2097 = vmul.f32 %v2025, %v2044
    %v2098 = vmul.f32 %v2026, %v2045
    %v2099 = vmul.f32 %v2027, %v2046
    %v2100 = vmul.f32 %v2028, %v2040
    %v2101 = vadd.f32 %v2053, %v2054
    %vm2102 = vcmask 556032
    %v2103 = vsel %vm2102, %v2055, 0.0
    %v2104 = vadd.f32 %v2101, %v2103
    %2105 = vadd.xlane.f32.xlu0 %v2104
    %v2106 = vpop.xlane.xlu0 %2105
    %v2107 = vadd.f32 %v2059, %v2060
    %v2108 = vsel %vm2102, %v2061, 0.0
    %v2109 = vadd.f32 %v2107, %v2108
    %2110 = vadd.xlane.f32.xlu0 %v2109
    %v2111 = vpop.xlane.xlu0 %2110
    %v2112 = vadd.f32 %v2065, %v2066
    %v2113 = vsel %vm2102, %v2067, 0.0
    %v2114 = vadd.f32 %v2112, %v2113
    %2115 = vadd.xlane.f32.xlu0 %v2114
    %v2116 = vpop.xlane.xlu0 %2115
    %v2117 = vadd.f32 %v2071, %v2072
    %v2118 = vsel %vm2102, %v2073, 0.0
    %v2119 = vadd.f32 %v2117, %v2118
    %2120 = vadd.xlane.f32.xlu0 %v2119
    %v2121 = vpop.xlane.xlu0 %2120
    %v2122 = vadd.f32 %v2077, %v2078
    %v2123 = vsel %vm2102, %v2079, 0.0
    %v2124 = vadd.f32 %v2122, %v2123
    %2125 = vadd.xlane.f32.xlu0 %v2124
    %v2126 = vpop.xlane.xlu0 %2125
    %v2127 = vadd.f32 %v2083, %v2084
    %v2128 = vsel %vm2102, %v2085, 0.0
    %v2129 = vadd.f32 %v2127, %v2128
    %2130 = vadd.xlane.f32.xlu0 %v2129
    %v2131 = vpop.xlane.xlu0 %2130
    %v2132 = vadd.f32 %v2089, %v2090
    %v2133 = vsel %vm2102, %v2091, 0.0
    %v2134 = vadd.f32 %v2132, %v2133
    %2135 = vadd.xlane.f32.xlu0 %v2134
    %v2136 = vpop.xlane.xlu0 %2135
    %v2137 = vadd.f32 %v2095, %v2096
    %v2138 = vsel %vm2102, %v2097, 0.0
    %v2139 = vadd.f32 %v2137, %v2138
    %2140 = vadd.xlane.f32.xlu0 %v2139
    %v2141 = vpop.xlane.xlu0 %2140
    %2174 = vrot.lane.b32.xlu0 %v2055, 60
    %v2175 = vpop.permute.xlu0 %2174
    %2176 = vrot.lane.b32.xlu0 %v2056, 60
    %v2177 = vpop.permute.xlu0 %2176
    %2178 = vrot.lane.b32.xlu0 %v2057, 60
    %v2179 = vpop.permute.xlu0 %2178
    %2180 = vrot.lane.b32.xlu0 %v2058, 60
    %v2181 = vpop.permute.xlu0 %2180
    %2182 = vrot.lane.b32.xlu0 %v2061, 60
    %v2183 = vpop.permute.xlu0 %2182
    %2184 = vrot.lane.b32.xlu0 %v2062, 60
    %v2185 = vpop.permute.xlu0 %2184
    %2186 = vrot.lane.b32.xlu0 %v2063, 60
    %v2187 = vpop.permute.xlu0 %2186
    %2188 = vrot.lane.b32.xlu0 %v2064, 60
    %v2189 = vpop.permute.xlu0 %2188
    %2190 = vrot.lane.b32.xlu0 %v2067, 60
    %v2191 = vpop.permute.xlu0 %2190
    %2192 = vrot.lane.b32.xlu0 %v2068, 60
    %v2193 = vpop.permute.xlu0 %2192
    %2194 = vrot.lane.b32.xlu0 %v2069, 60
    %v2195 = vpop.permute.xlu0 %2194
    %2196 = vrot.lane.b32.xlu0 %v2070, 60
    %v2197 = vpop.permute.xlu0 %2196
    %2198 = vrot.lane.b32.xlu0 %v2073, 60
    %v2199 = vpop.permute.xlu0 %2198
    %2200 = vrot.lane.b32.xlu0 %v2074, 60
    %v2201 = vpop.permute.xlu0 %2200
    %2202 = vrot.lane.b32.xlu0 %v2075, 60
    %v2203 = vpop.permute.xlu0 %2202
    %2204 = vrot.lane.b32.xlu0 %v2076, 60
    %v2205 = vpop.permute.xlu0 %2204
    %2206 = vrot.lane.b32.xlu0 %v2079, 60
    %v2207 = vpop.permute.xlu0 %2206
    %2208 = vrot.lane.b32.xlu0 %v2080, 60
    %v2209 = vpop.permute.xlu0 %2208
    %2210 = vrot.lane.b32.xlu0 %v2081, 60
    %v2211 = vpop.permute.xlu0 %2210
    %2212 = vrot.lane.b32.xlu0 %v2082, 60
    %v2213 = vpop.permute.xlu0 %2212
    %2214 = vrot.lane.b32.xlu0 %v2085, 60
    %v2215 = vpop.permute.xlu0 %2214
    %2216 = vrot.lane.b32.xlu0 %v2086, 60
    %v2217 = vpop.permute.xlu0 %2216
    %2218 = vrot.lane.b32.xlu0 %v2087, 60
    %v2219 = vpop.permute.xlu0 %2218
    %2220 = vrot.lane.b32.xlu0 %v2088, 60
    %v2221 = vpop.permute.xlu0 %2220
    %2222 = vrot.lane.b32.xlu0 %v2091, 60
    %v2223 = vpop.permute.xlu0 %2222
    %2224 = vrot.lane.b32.xlu0 %v2092, 60
    %v2225 = vpop.permute.xlu0 %2224
    %2226 = vrot.lane.b32.xlu0 %v2093, 60
    %v2227 = vpop.permute.xlu0 %2226
    %2228 = vrot.lane.b32.xlu0 %v2094, 60
    %v2229 = vpop.permute.xlu0 %2228
    %2230 = vrot.lane.b32.xlu0 %v2097, 60
    %v2231 = vpop.permute.xlu0 %2230
    %2232 = vrot.lane.b32.xlu0 %v2098, 60
    %v2233 = vpop.permute.xlu0 %2232
    %2234 = vrot.lane.b32.xlu0 %v2099, 60
    %v2235 = vpop.permute.xlu0 %2234
    %2236 = vrot.lane.b32.xlu0 %v2100, 60
    %v2237 = vpop.permute.xlu0 %2236
    %vm2238 = vcmask 490496
    %v2239 = vsel %vm2238, %v2175, %v2177
    %v2240 = vsel %vm2238, %v2177, %v2179
    %v2241 = vsel %vm2238, %v2179, %v2181
    %v2242 = vsel %vm2238, %v2183, %v2185
    %v2243 = vsel %vm2238, %v2185, %v2187
    %v2244 = vsel %vm2238, %v2187, %v2189
    %v2245 = vsel %vm2238, %v2191, %v2193
    %v2246 = vsel %vm2238, %v2193, %v2195
    %v2247 = vsel %vm2238, %v2195, %v2197
    %v2248 = vsel %vm2238, %v2199, %v2201
    %v2249 = vsel %vm2238, %v2201, %v2203
    %v2250 = vsel %vm2238, %v2203, %v2205
    %v2251 = vsel %vm2238, %v2207, %v2209
    %v2252 = vsel %vm2238, %v2209, %v2211
    %v2253 = vsel %vm2238, %v2211, %v2213
    %v2254 = vsel %vm2238, %v2215, %v2217
    %v2255 = vsel %vm2238, %v2217, %v2219
    %v2256 = vsel %vm2238, %v2219, %v2221
    %v2257 = vsel %vm2238, %v2223, %v2225
    %v2258 = vsel %vm2238, %v2225, %v2227
    %v2259 = vsel %vm2238, %v2227, %v2229
    %v2260 = vsel %vm2238, %v2231, %v2233
    %v2261 = vsel %vm2238, %v2233, %v2235
    %v2262 = vsel %vm2238, %v2235, %v2237
    %v2287 = vadd.f32 %v2239, %v2240
    %v2288 = vsel %vm2102, %v2241, 0.0
    %v2289 = vadd.f32 %v2287, %v2288
    %2290 = vadd.xlane.f32.xlu0 %v2289
    %v2291 = vpop.xlane.xlu0 %2290
    %v2292 = vadd.f32 %v2242, %v2243
    %v2293 = vsel %vm2102, %v2244, 0.0
    %v2294 = vadd.f32 %v2292, %v2293
    %2295 = vadd.xlane.f32.xlu0 %v2294
    %v2296 = vpop.xlane.xlu0 %2295
    %v2297 = vadd.f32 %v2245, %v2246
    %v2298 = vsel %vm2102, %v2247, 0.0
    %v2299 = vadd.f32 %v2297, %v2298
    %2300 = vadd.xlane.f32.xlu0 %v2299
    %v2301 = vpop.xlane.xlu0 %2300
    %v2302 = vadd.f32 %v2248, %v2249
    %v2303 = vsel %vm2102, %v2250, 0.0
    %v2304 = vadd.f32 %v2302, %v2303
    %2305 = vadd.xlane.f32.xlu0 %v2304
    %v2306 = vpop.xlane.xlu0 %2305
    %v2307 = vadd.f32 %v2251, %v2252
    %v2308 = vsel %vm2102, %v2253, 0.0
    %v2309 = vadd.f32 %v2307, %v2308
    %2310 = vadd.xlane.f32.xlu0 %v2309
    %v2311 = vpop.xlane.xlu0 %2310
    %v2312 = vadd.f32 %v2254, %v2255
    %v2313 = vsel %vm2102, %v2256, 0.0
    %v2314 = vadd.f32 %v2312, %v2313
    %2315 = vadd.xlane.f32.xlu0 %v2314
    %v2316 = vpop.xlane.xlu0 %2315
    %v2317 = vadd.f32 %v2257, %v2258
    %v2318 = vsel %vm2102, %v2259, 0.0
    %v2319 = vadd.f32 %v2317, %v2318
    %2320 = vadd.xlane.f32.xlu0 %v2319
    %v2321 = vpop.xlane.xlu0 %2320
    %v2322 = vadd.f32 %v2260, %v2261
    %v2323 = vsel %vm2102, %v2262, 0.0
    %v2324 = vadd.f32 %v2322, %v2323
    %2325 = vadd.xlane.f32.xlu0 %v2324
    %v2326 = vpop.xlane.xlu0 %2325
    %vm2327 = vcmask 7168
    %v2328 = vsel %vm2327, %v2106, %v2291
    %v2329 = vsel %vm2327, %v2111, %v2296
    %v2330 = vsel %vm2327, %v2116, %v2301
    %v2331 = vsel %vm2327, %v2121, %v2306
    %v2332 = vsel %vm2327, %v2126, %v2311
    %v2333 = vsel %vm2327, %v2131, %v2316
    %v2334 = vsel %vm2327, %v2136, %v2321
    %v2335 = vsel %vm2327, %v2141, %v2326
    %v2336 = vmul.f32 %v2328, 0.00390625
    %v2337 = vmul.f32 %v2329, 0.00390625
    %v2338 = vmul.f32 %v2330, 0.00390625
    %v2339 = vmul.f32 %v2331, 0.00390625
    %v2340 = vmul.f32 %v2332, 0.00390625
    %v2341 = vmul.f32 %v2333, 0.00390625
    %v2342 = vmul.f32 %v2334, 0.00390625
    %v2343 = vmul.f32 %v2335, 0.00390625
    %v2344 = vld [vmem:[%s1] sm:$0xf]
    %vm2345 = vcmask 31744
    %v2347 = vsel %vm2345, %v56, 0
    %v2350 = vsel %vm2345, %v57, 0
    %v2353 = vsel %vm2345, %v58, 0
    %v2356 = vsel %vm2345, %v59, 0
    %v2359 = vsel %vm2345, %v60, 0
    %v2362 = vsel %vm2345, %v61, 0
    %v2365 = vsel %vm2345, %v62, 0
    %v2368 = vsel %vm2345, %v63, 0
    %v2371 = vsel %vm326, %v2344, 0
    %2373 = vmatpush.msra.mxu0 0.0
    %2374 = vmatpush.msra.mxu0 0.0
    %2375 = vmatpush.msra.mxu0 0.0
    %2376 = vmatpush.msra.mxu0 0.0
    %2377 = vmatpush.msra.mxu0 0.0
    %2378 = vmatpush.msra.mxu0 0.0
    %2379 = vmatpush.msra.mxu0 0.0
    %2380 = vmatpush.msra.mxu0 0.0
    %2381 = vmatpush.msra.mxu0 0.0
    %2382 = vmatpush.msra.mxu0 0.0
    %2383 = vmatpush.msra.mxu0 0.0
    %2384 = vmatpush.msra.mxu0 0.0
    %2385 = vmatpush.msra.mxu0 0.0
    %2386 = vmatpush.msra.mxu0 0.0
    %2387 = vmatpush.msra.mxu0 0.0
    %2388 = vmatpush.msra.mxu0 %v2371
    %2389 = vmatmul.f32.gmra.mxu0 %v2347
    %v2390 = vpop.f32.mrf.mxu0
    %v2391 = vadd.f32 0.0, %v2390
    %2392 = vmatmul.f32.gmra.mxu0 %v2350
    %v2393 = vpop.f32.mrf.mxu0
    %v2394 = vadd.f32 0.0, %v2393
    %2395 = vmatmul.f32.gmra.mxu0 %v2353
    %v2396 = vpop.f32.mrf.mxu0
    %v2397 = vadd.f32 0.0, %v2396
    %2398 = vmatmul.f32.gmra.mxu0 %v2356
    %v2399 = vpop.f32.mrf.mxu0
    %v2400 = vadd.f32 0.0, %v2399
    %2401 = vmatmul.f32.gmra.mxu0 %v2359
    %v2402 = vpop.f32.mrf.mxu0
    %v2403 = vadd.f32 0.0, %v2402
    %2404 = vmatmul.f32.gmra.mxu0 %v2362
    %v2405 = vpop.f32.mrf.mxu0
    %v2406 = vadd.f32 0.0, %v2405
    %2407 = vmatmul.f32.gmra.mxu0 %v2365
    %v2408 = vpop.f32.mrf.mxu0
    %v2409 = vadd.f32 0.0, %v2408
    %2410 = vmatmul.f32.gmra.mxu0 %v2368
    %v2411 = vpop.f32.mrf.mxu0
    %v2412 = vadd.f32 0.0, %v2411
    %2413 = vdwg.mxu0
    %vm2414 = vcmask 523264
    %v2416 = vsel %vm2414, %v48, 0
    %v2419 = vsel %vm2414, %v49, 0
    %v2422 = vsel %vm2414, %v50, 0
    %v2425 = vsel %vm2414, %v51, 0
    %v2428 = vsel %vm2414, %v52, 0
    %v2431 = vsel %vm2414, %v53, 0
    %v2434 = vsel %vm2414, %v54, 0
    %v2437 = vsel %vm2414, %v55, 0
    %2439 = vmatpush.msra.mxu0 0.0
    %2440 = vmatpush.msra.mxu0 0.0
    %2441 = vmatpush.msra.mxu0 0.0
    %2442 = vmatpush.msra.mxu0 0.0
    %2443 = vmatpush.msra.mxu0 0.0
    %2444 = vmatpush.msra.mxu0 0.0
    %2445 = vmatpush.msra.mxu0 0.0
    %2446 = vmatpush.msra.mxu0 0.0
    %2447 = vmatpush.msra.mxu0 %v2343
    %2448 = vmatpush.msra.mxu0 %v2342
    %2449 = vmatpush.msra.mxu0 %v2341
    %2450 = vmatpush.msra.mxu0 %v2340
    %2451 = vmatpush.msra.mxu0 %v2339
    %2452 = vmatpush.msra.mxu0 %v2338
    %2453 = vmatpush.msra.mxu0 %v2337
    %2454 = vmatpush.msra.mxu0 %v2336
    %2455 = vmatmul.f32.gmra.mxu0 %v2416
    %v2456 = vpop.f32.mrf.mxu0
    %v2457 = vadd.f32 %v2391, %v2456
    %2458 = vmatmul.f32.gmra.mxu0 %v2419
    %v2459 = vpop.f32.mrf.mxu0
    %v2460 = vadd.f32 %v2394, %v2459
    %2461 = vmatmul.f32.gmra.mxu0 %v2422
    %v2462 = vpop.f32.mrf.mxu0
    %v2463 = vadd.f32 %v2397, %v2462
    %2464 = vmatmul.f32.gmra.mxu0 %v2425
    %v2465 = vpop.f32.mrf.mxu0
    %v2466 = vadd.f32 %v2400, %v2465
    %2467 = vmatmul.f32.gmra.mxu0 %v2428
    %v2468 = vpop.f32.mrf.mxu0
    %v2469 = vadd.f32 %v2403, %v2468
    %2470 = vmatmul.f32.gmra.mxu0 %v2431
    %v2471 = vpop.f32.mrf.mxu0
    %v2472 = vadd.f32 %v2406, %v2471
    %2473 = vmatmul.f32.gmra.mxu0 %v2434
    %v2474 = vpop.f32.mrf.mxu0
    %v2475 = vadd.f32 %v2409, %v2474
    %2476 = vmatmul.f32.gmra.mxu0 %v2437
    %v2477 = vpop.f32.mrf.mxu0
    %v2478 = vadd.f32 %v2412, %v2477
    %2479 = vdwg.mxu0
    %2480 = vset.pattern.permute.xlu0 4
    %2481 = vperm.xlu0 %2480, %v56
    %v2482 = vpop.permute.xlu0 %2481
    %2484 = vset.pattern.permute.xlu0 4
    %2485 = vperm.xlu0 %2484, %v57
    %v2486 = vpop.permute.xlu0 %2485
    %2488 = vset.pattern.permute.xlu0 4
    %2489 = vperm.xlu0 %2488, %v58
    %v2490 = vpop.permute.xlu0 %2489
    %2492 = vset.pattern.permute.xlu0 4
    %2493 = vperm.xlu0 %2492, %v59
    %v2494 = vpop.permute.xlu0 %2493
    %2496 = vset.pattern.permute.xlu0 4
    %2497 = vperm.xlu0 %2496, %v60
    %v2498 = vpop.permute.xlu0 %2497
    %2500 = vset.pattern.permute.xlu0 4
    %2501 = vperm.xlu0 %2500, %v61
    %v2502 = vpop.permute.xlu0 %2501
    %2504 = vset.pattern.permute.xlu0 4
    %2505 = vperm.xlu0 %2504, %v62
    %v2506 = vpop.permute.xlu0 %2505
    %2508 = vset.pattern.permute.xlu0 4
    %2509 = vperm.xlu0 %2508, %v63
    %v2510 = vpop.permute.xlu0 %2509
    %v2512 = vadd.f32 %v2457, %v2482
    %v2513 = vadd.f32 %v2460, %v2486
    %v2514 = vadd.f32 %v2463, %v2490
    %v2515 = vadd.f32 %v2466, %v2494
    %v2516 = vadd.f32 %v2469, %v2498
    %v2517 = vadd.f32 %v2472, %v2502
    %v2518 = vadd.f32 %v2475, %v2506
    %v2519 = vadd.f32 %v2478, %v2510
    %vm2520 = vcmp.gt.f32.partialorder %v2512, 0.0
    %vm2521 = vcmp.gt.f32.partialorder %v2513, 0.0
    %vm2522 = vcmp.gt.f32.partialorder %v2514, 0.0
    %vm2523 = vcmp.gt.f32.partialorder %v2515, 0.0
    %vm2524 = vcmp.gt.f32.partialorder %v2516, 0.0
    %vm2525 = vcmp.gt.f32.partialorder %v2517, 0.0
    %vm2526 = vcmp.gt.f32.partialorder %v2518, 0.0
    %vm2527 = vcmp.gt.f32.partialorder %v2519, 0.0
    %v2528 = vmul.f32 %v2512, 0.01
    %v2529 = vmul.f32 %v2513, 0.01
    %v2530 = vmul.f32 %v2514, 0.01
    %v2531 = vmul.f32 %v2515, 0.01
    %v2532 = vmul.f32 %v2516, 0.01
    %v2533 = vmul.f32 %v2517, 0.01
    %v2534 = vmul.f32 %v2518, 0.01
    %v2535 = vmul.f32 %v2519, 0.01
    %v2536 = vsel %vm2520, %v2512, %v2528
    %v2537 = vsel %vm2521, %v2513, %v2529
    %v2538 = vsel %vm2522, %v2514, %v2530
    %v2539 = vsel %vm2523, %v2515, %v2531
    %v2540 = vsel %vm2524, %v2516, %v2532
    %v2541 = vsel %vm2525, %v2517, %v2533
    %v2542 = vsel %vm2526, %v2518, %v2534
    %v2543 = vsel %vm2527, %v2519, %v2535
    %2544 = vset.pattern.permute.xlu0 5
    %2545 = vperm.xlu0 %2544, %v56
    %v2546 = vpop.permute.xlu0 %2545
    %2548 = vset.pattern.permute.xlu0 5
    %2549 = vperm.xlu0 %2548, %v57
    %v2550 = vpop.permute.xlu0 %2549
    %2552 = vset.pattern.permute.xlu0 5
    %2553 = vperm.xlu0 %2552, %v58
    %v2554 = vpop.permute.xlu0 %2553
    %2556 = vset.pattern.permute.xlu0 5
    %2557 = vperm.xlu0 %2556, %v59
    %v2558 = vpop.permute.xlu0 %2557
    %2560 = vset.pattern.permute.xlu0 5
    %2561 = vperm.xlu0 %2560, %v60
    %v2562 = vpop.permute.xlu0 %2561
    %2564 = vset.pattern.permute.xlu0 5
    %2565 = vperm.xlu0 %2564, %v61
    %v2566 = vpop.permute.xlu0 %2565
    %2568 = vset.pattern.permute.xlu0 5
    %2569 = vperm.xlu0 %2568, %v62
    %v2570 = vpop.permute.xlu0 %2569
    %2572 = vset.pattern.permute.xlu0 5
    %2573 = vperm.xlu0 %2572, %v63
    %v2574 = vpop.permute.xlu0 %2573
    %2576 = vrot.lane.b32.xlu0 %v48, 64
    %v2577 = vpop.permute.xlu0 %2576
    %2578 = vrot.lane.b32.xlu0 %v49, 64
    %v2579 = vpop.permute.xlu0 %2578
    %2580 = vrot.lane.b32.xlu0 %v50, 64
    %v2581 = vpop.permute.xlu0 %2580
    %2582 = vrot.lane.b32.xlu0 %v51, 64
    %v2583 = vpop.permute.xlu0 %2582
    %2584 = vrot.lane.b32.xlu0 %v52, 64
    %v2585 = vpop.permute.xlu0 %2584
    %2586 = vrot.lane.b32.xlu0 %v53, 64
    %v2587 = vpop.permute.xlu0 %2586
    %2588 = vrot.lane.b32.xlu0 %v54, 64
    %v2589 = vpop.permute.xlu0 %2588
    %2590 = vrot.lane.b32.xlu0 %v55, 64
    %v2591 = vpop.permute.xlu0 %2590
    %v2592 = vsel %vm2414, %v2577, 0
    %v2594 = vsel %vm2414, %v2579, 0
    %v2596 = vsel %vm2414, %v2581, 0
    %v2598 = vsel %vm2414, %v2583, 0
    %v2600 = vsel %vm2414, %v2585, 0
    %v2602 = vsel %vm2414, %v2587, 0
    %v2604 = vsel %vm2414, %v2589, 0
    %v2606 = vsel %vm2414, %v2591, 0
    %2608 = vmatpush.msra.mxu0 0.0
    %2609 = vmatpush.msra.mxu0 0.0
    %2610 = vmatpush.msra.mxu0 0.0
    %2611 = vmatpush.msra.mxu0 0.0
    %2612 = vmatpush.msra.mxu0 0.0
    %2613 = vmatpush.msra.mxu0 0.0
    %2614 = vmatpush.msra.mxu0 0.0
    %2615 = vmatpush.msra.mxu0 0.0
    %2616 = vmatpush.msra.mxu0 %v2543
    %2617 = vmatpush.msra.mxu0 %v2542
    %2618 = vmatpush.msra.mxu0 %v2541
    %2619 = vmatpush.msra.mxu0 %v2540
    %2620 = vmatpush.msra.mxu0 %v2539
    %2621 = vmatpush.msra.mxu0 %v2538
    %2622 = vmatpush.msra.mxu0 %v2537
    %2623 = vmatpush.msra.mxu0 %v2536
    %2624 = vmatmul.f32.gmra.mxu0 %v2592
    %v2625 = vpop.f32.mrf.mxu0
    %v2626 = vadd.f32 %v2546, %v2625
    %2627 = vmatmul.f32.gmra.mxu0 %v2594
    %v2628 = vpop.f32.mrf.mxu0
    %v2629 = vadd.f32 %v2550, %v2628
    %2630 = vmatmul.f32.gmra.mxu0 %v2596
    %v2631 = vpop.f32.mrf.mxu0
    %v2632 = vadd.f32 %v2554, %v2631
    %2633 = vmatmul.f32.gmra.mxu0 %v2598
    %v2634 = vpop.f32.mrf.mxu0
    %v2635 = vadd.f32 %v2558, %v2634
    %2636 = vmatmul.f32.gmra.mxu0 %v2600
    %v2637 = vpop.f32.mrf.mxu0
    %v2638 = vadd.f32 %v2562, %v2637
    %2639 = vmatmul.f32.gmra.mxu0 %v2602
    %v2640 = vpop.f32.mrf.mxu0
    %v2641 = vadd.f32 %v2566, %v2640
    %2642 = vmatmul.f32.gmra.mxu0 %v2604
    %v2643 = vpop.f32.mrf.mxu0
    %v2644 = vadd.f32 %v2570, %v2643
    %2645 = vmatmul.f32.gmra.mxu0 %v2606
    %v2646 = vpop.f32.mrf.mxu0
    %v2647 = vadd.f32 %v2574, %v2646
    %2648 = vdwg.mxu0
    %vm2649 = vcmp.gt.f32.partialorder %v2626, 0.0
    %vm2650 = vcmp.gt.f32.partialorder %v2629, 0.0
    %vm2651 = vcmp.gt.f32.partialorder %v2632, 0.0
    %vm2652 = vcmp.gt.f32.partialorder %v2635, 0.0
    %vm2653 = vcmp.gt.f32.partialorder %v2638, 0.0
    %vm2654 = vcmp.gt.f32.partialorder %v2641, 0.0
    %vm2655 = vcmp.gt.f32.partialorder %v2644, 0.0
    %vm2656 = vcmp.gt.f32.partialorder %v2647, 0.0
    %v2657 = vmul.f32 %v2626, 0.01
    %v2658 = vmul.f32 %v2629, 0.01
    %v2659 = vmul.f32 %v2632, 0.01
    %v2660 = vmul.f32 %v2635, 0.01
    %v2661 = vmul.f32 %v2638, 0.01
    %v2662 = vmul.f32 %v2641, 0.01
    %v2663 = vmul.f32 %v2644, 0.01
    %v2664 = vmul.f32 %v2647, 0.01
    %v2665 = vsel %vm2649, %v2626, %v2657
    %v2666 = vsel %vm2650, %v2629, %v2658
    %v2667 = vsel %vm2651, %v2632, %v2659
    %v2668 = vsel %vm2652, %v2635, %v2660
    %v2669 = vsel %vm2653, %v2638, %v2661
    %v2670 = vsel %vm2654, %v2641, %v2662
    %v2671 = vsel %vm2655, %v2644, %v2663
    %v2672 = vsel %vm2656, %v2647, %v2664
    %2674 = vset.pattern.permute.xlu0 70
    %2675 = vperm.xlu0 %2674, %v64
    %v2676 = vpop.permute.xlu0 %2675
    %2678 = vrot.lane.b32.xlu0 %v64, 122
    %v2679 = vpop.permute.xlu0 %2678
    %v2680 = vsel %vm2414, %v2679, 0
    %2682 = vmatpush.msra.mxu0 0.0
    %2683 = vmatpush.msra.mxu0 0.0
    %2684 = vmatpush.msra.mxu0 0.0
    %2685 = vmatpush.msra.mxu0 0.0
    %2686 = vmatpush.msra.mxu0 0.0
    %2687 = vmatpush.msra.mxu0 0.0
    %2688 = vmatpush.msra.mxu0 0.0
    %2689 = vmatpush.msra.mxu0 0.0
    %2690 = vmatpush.msra.mxu0 %v2672
    %2691 = vmatpush.msra.mxu0 %v2671
    %2692 = vmatpush.msra.mxu0 %v2670
    %2693 = vmatpush.msra.mxu0 %v2669
    %2694 = vmatpush.msra.mxu0 %v2668
    %2695 = vmatpush.msra.mxu0 %v2667
    %2696 = vmatpush.msra.mxu0 %v2666
    %2697 = vmatpush.msra.mxu0 %v2665
    %2698 = vmatmul.f32.gmra.mxu0 %v2680
    %v2699 = vpop.f32.mrf.mxu0
    %v2700 = vadd.f32 %v2676, %v2699
    %2701 = vdwg.mxu0
    %vm2702 = vcmask 9216
    %2703 = vst.msk [vmem:[%s3] sm:$0x3] %vm2702, %v2700
    // Predicated region
    $region18: #{critic_forward.1} parent=1 // pred_check
      _
    $region19: #{critic_forward.1} parent=1 // pred_check_branch
      %2705 = sbr.rel (0) target = $region21
    $region20: #{critic_forward.1} parent=1 // pred_region
      _
    $region21: #{critic_forward.1} parent=1 // pred_fallthru
      _
    // Predicated region
    $region22: #{critic_forward.1} parent=1 // pred_check
      _
    $region23: #{critic_forward.1} parent=1 // pred_check_branch
      %2707 = sbr.rel (0) target = $region25
    $region24: #{critic_forward.1} parent=1 // pred_region
      _
    $region25: #{critic_forward.1} parent=1 // pred_fallthru
      _
    %2708 = vsyncpa [#allocation3], 1

</llo_original>
